<compile_context>
chip_gen: v5e
topology: v5e:2x2
jax: 0.10.0
libtpu: 0.0.40
codegen_flags: <defaults>
</compile_context>

<pallas_src>
import functools

import jax
import jax.numpy as jnp
import numpy as np
from jax.experimental import pallas as pl
from jax.experimental.pallas import tpu as pltpu


# ---------------------------------------------------------------------------
# helpers (traced inside the kernel)
# ---------------------------------------------------------------------------
def _layer_norm(x, gamma, beta, eps=1e-6):
    # PyTorch nn.LayerNorm(d_model, eps=1e-6): biased variance over last dim.
    mean = jnp.mean(x, axis=-1, keepdims=True)
    var = jnp.mean((x - mean) ** 2, axis=-1, keepdims=True)
    return (x - mean) * jax.lax.rsqrt(var + eps) * gamma + beta


def _gelu_tanh(x):
    # TODO(synk): PyTorch F.gelu default is the exact erf formulation; erf lowering
    # support in Mosaic varies, so the standard tanh approximation is used here.
    c = np.float32(np.sqrt(2.0 / np.pi))
    return 0.5 * x * (1.0 + jnp.tanh(c * (x + 0.044715 * x * x * x)))


# ---------------------------------------------------------------------------
# Pallas kernel: one grid step == one batch element
# ---------------------------------------------------------------------------
def encoder_layer_kernel(n_head, d_k, d_v,
                         x_ref, mask_ref, npm_ref,
                         wq_ref, wk_ref, wv_ref, wo_ref, bo_ref,
                         ln1_g_ref, ln1_b_ref,
                         w1_ref, b1_ref, w2_ref, b2_ref,
                         ln2_g_ref, ln2_b_ref,
                         out_ref, attn_ref):
    f32 = jnp.float32
    bf16 = jnp.bfloat16

    x = x_ref[0]          # (L, D)  f32
    mask = mask_ref[0]    # (L, L)  f32, 1.0 == masked
    npm = npm_ref[0]      # (L, 1)  f32

    L, D = x.shape
    H = n_head

    # ---------------- MultiHeadAttention (pre-norm, dropout == identity) ----
    residual = x
    xn = _layer_norm(x, ln1_g_ref[...], ln1_b_ref[...])      # f32
    xnb = xn.astype(bf16)

    # Broadcast the normalized activations once over heads: every per-head
    # projection becomes ONE head-batched MXU matmul (no slicing / concat).
    xh = jnp.broadcast_to(xnb[None, :, :], (H, L, D))         # (H, L, D) bf16

    q = jnp.einsum("hld,hdk->hlk", xh, wq_ref[...],
                   preferred_element_type=f32)                 # (H, L, dk) f32
    k = jnp.einsum("hld,hdk->hlk", xh, wk_ref[...],
                   preferred_element_type=f32)                 # (H, L, dk) f32
    v = jnp.einsum("hld,hdv->hlv", xh, wv_ref[...],
                   preferred_element_type=f32)                 # (H, L, dv) f32

    inv_temp = f32(1.0 / (d_k ** 0.5))
    qb = (q * inv_temp).astype(bf16)
    kb = k.astype(bf16)

    scores = jnp.einsum("hqd,hkd->hqk", qb, kb,
                        preferred_element_type=f32)            # (H, L, L) f32

    # Hoisted mask: a single (L, L) select, broadcast over heads via the add.
    bias = jnp.where(mask > 0.5, f32(-1e9), f32(0.0))          # (L, L)
    s = scores + bias[None, :, :]

    m = jnp.max(s, axis=-1, keepdims=True)
    p = jnp.exp(s - m)
    denom = jnp.sum(p, axis=-1, keepdims=True)
    p = p * pl.reciprocal(denom, approx=True)                  # EUP slot

    attn_ref[0] = p                                            # one-shot store

    ctx = jnp.einsum("hqk,hkv->hqv", p.astype(bf16), v.astype(bf16),
                     preferred_element_type=f32)               # (H, L, dv) f32

    # concat_heads(ctx) @ Wfc  ==  sum_h ctx_h @ Wfc_h  (head-batched + reduce)
    o_h = jnp.einsum("hqv,hvd->hqd", ctx.astype(bf16), wo_ref[...],
                     preferred_element_type=f32)               # (H, L, D) f32
    o = jnp.sum(o_h, axis=0) + bo_ref[...]
    o = o + residual
    o = o * npm                                                # enc_output *= non_pad_mask

    # ---------------- PositionwiseFeedForward (pre-norm) --------------------
    residual2 = o
    on = _layer_norm(o, ln2_g_ref[...], ln2_b_ref[...])
    h1 = jnp.dot(on.astype(bf16), w1_ref[...],
                 preferred_element_type=f32) + b1_ref[...]
    h1 = _gelu_tanh(h1)
    h2 = jnp.dot(h1.astype(bf16), w2_ref[...],
                 preferred_element_type=f32) + b2_ref[...]
    y = (h2 + residual2) * npm                                 # final *= non_pad_mask
    out_ref[0] = y


# ---------------------------------------------------------------------------
# wrapper
# ---------------------------------------------------------------------------
def encoder_layer(enc_input, slf_attn_mask, non_pad_mask, params, n_head, d_k, d_v):
    B, L, D = enc_input.shape
    d_inner = params["w1"].shape[1]
    bf16 = jnp.bfloat16

    # Pre-arrange weights per head (pure JAX, done once, outside the kernel):
    #   Wq/Wk (D, H*dk) -> (H, D, dk) ; Wv (D, H*dv) -> (H, D, dv)
    #   Wfc (H*dv, D)   -> (H, dv, D)
    # Matmul weights are cast to bf16 (MXU-native, halves VMEM/HBM traffic);
    # biases and LayerNorm parameters stay f32.
    wq3 = jnp.transpose(params["wq"].reshape(D, n_head, d_k), (1, 0, 2)).astype(bf16)
    wk3 = jnp.transpose(params["wk"].reshape(D, n_head, d_k), (1, 0, 2)).astype(bf16)
    wv3 = jnp.transpose(params["wv"].reshape(D, n_head, d_v), (1, 0, 2)).astype(bf16)
    wo3 = params["wo"].reshape(n_head, d_v, D).astype(bf16)
    w1b = params["w1"].astype(bf16)
    w2b = params["w2"].astype(bf16)

    kernel = functools.partial(encoder_layer_kernel, n_head, d_k, d_v)

    def const_spec(shape):
        n = len(shape)
        return pl.BlockSpec(shape, lambda b, _n=n: (0,) * _n)

    in_specs = [
        pl.BlockSpec((1, L, D), lambda b: (b, 0, 0)),         # enc_input
        pl.BlockSpec((1, L, L), lambda b: (b, 0, 0)),         # slf_attn_mask
        pl.BlockSpec((1, L, 1), lambda b: (b, 0, 0)),         # non_pad_mask
        const_spec((n_head, D, d_k)),                         # Wq (per head)
        const_spec((n_head, D, d_k)),                         # Wk (per head)
        const_spec((n_head, D, d_v)),                         # Wv (per head)
        const_spec((n_head, d_v, D)),                         # Wfc (per head)
        const_spec((1, D)),                                   # bfc
        const_spec((1, D)), const_spec((1, D)),               # ln1 gamma/beta
        const_spec((D, d_inner)), const_spec((1, d_inner)),   # W1, b1
        const_spec((d_inner, D)), const_spec((1, D)),         # W2, b2
        const_spec((1, D)), const_spec((1, D)),               # ln2 gamma/beta
    ]
    out_specs = [
        pl.BlockSpec((1, L, D), lambda b: (b, 0, 0)),
        pl.BlockSpec((1, n_head, L, L), lambda b: (b, 0, 0, 0)),
    ]
    out_shape = [
        jax.ShapeDtypeStruct((B, L, D), jnp.float32),
        jax.ShapeDtypeStruct((B, n_head, L, L), jnp.float32),
    ]

    return pl.pallas_call(
        kernel,
        out_shape=out_shape,
        grid_spec=pltpu.PrefetchScalarGridSpec(
            num_scalar_prefetch=0,
            grid=(B,),
            in_specs=in_specs,
            out_specs=out_specs,
        ),
        compiler_params=pltpu.CompilerParams(
            dimension_semantics=("parallel",),
            vmem_limit_bytes=48 * 1024 * 1024,
        ),
    )(enc_input, slf_attn_mask, non_pad_mask,
      wq3, wk3, wv3, wo3, params["bo"],
      params["ln1_g"], params["ln1_b"],
      w1b, params["b1"], w2b, params["b2"],
      params["ln2_g"], params["ln2_b"])


# ---------------------------------------------------------------------------
# pure-JAX reference (f32, same math; kernel uses bf16 matmul operands so the
# comparison tolerance is set accordingly)
# ---------------------------------------------------------------------------
def encoder_layer_ref(x, mask, npm, p, n_head, d_k, d_v):
    B, L, D = x.shape

    def ln(z, g, b):
        m = jnp.mean(z, axis=-1, keepdims=True)
        v = jnp.mean((z - m) ** 2, axis=-1, keepdims=True)
        return (z - m) / jnp.sqrt(v + 1e-6) * g + b

    residual = x
    xn = ln(x, p["ln1_g"], p["ln1_b"])
    q = (xn @ p["wq"]).reshape(B, L, n_head, d_k).transpose(0, 2, 1, 3)
    k = (xn @ p["wk"]).reshape(B, L, n_head, d_k).transpose(0, 2, 1, 3)
    v = (xn @ p["wv"]).reshape(B, L, n_head, d_v).transpose(0, 2, 1, 3)
    s = jnp.einsum("bhqd,bhkd->bhqk", q, k) / (d_k ** 0.5)
    s = jnp.where(mask[:, None] > 0.5, -1e9, s)
    attn = jax.nn.softmax(s, axis=-1)
    o = jnp.einsum("bhqk,bhkd->bhqd", attn, v).transpose(0, 2, 1, 3).reshape(B, L, n_head * d_v)
    o = o @ p["wo"] + p["bo"]
    o = o + residual
    o = o * npm

    residual2 = o
    on = ln(o, p["ln2_g"], p["ln2_b"])
    h1 = _gelu_tanh(on @ p["w1"] + p["b1"])
    y = h1 @ p["w2"] + p["b2"] + residual2
    y = y * npm
    return y, attn


# ---------------------------------------------------------------------------
if __name__ == "__main__":
    B, L = 2, 8
    d_model, d_inner, n_head, d_k, d_v = 32, 64, 4, 8, 8

    key = jax.random.PRNGKey(0)
    keys = jax.random.split(key, 12)

    def init(k, shape, scale=0.1):
        return (scale * jax.random.normal(k, shape)).astype(jnp.float32)

    # Deterministic synthetic parameters (shapes follow the PyTorch __init__;
    # nn.Linear weights are stored (out,in) in torch — here pre-transposed to (in,out)).
    params = dict(
        wq=init(keys[0], (d_model, n_head * d_k)),
        wk=init(keys[1], (d_model, n_head * d_k)),
        wv=init(keys[2], (d_model, n_head * d_v)),
        wo=init(keys[3], (n_head * d_v, d_model)),
        bo=init(keys[4], (1, d_model)),
        ln1_g=jnp.ones((1, d_model), jnp.float32),
        ln1_b=jnp.zeros((1, d_model), jnp.float32),
        w1=init(keys[5], (d_model, d_inner)),
        b1=init(keys[6], (1, d_inner)),
        w2=init(keys[7], (d_inner, d_model)),
        b2=init(keys[8], (1, d_model)),
        ln2_g=jnp.ones((1, d_model), jnp.float32),
        ln2_b=jnp.zeros((1, d_model), jnp.float32),
    )

    enc_input = init(keys[9], (B, L, d_model), scale=1.0)

    # non_pad_mask: (B, L, 1), 1.0 == real token (second sequence has 2 pads).
    lengths = [L, L - 2]
    npm_np = np.zeros((B, L, 1), np.float32)
    for b in range(B):
        npm_np[b, :lengths[b], 0] = 1.0
    non_pad_mask = jnp.asarray(npm_np)

    # slf_attn_mask: (B, L, L), 1.0 == masked (causal OR key-padding), as in THP.
    causal = np.triu(np.ones((L, L), np.float32), k=1)
    key_pad = (1.0 - npm_np[:, :, 0])[:, None, :]
    slf_attn_mask = jnp.asarray(np.clip(causal[None] + key_pad, 0.0, 1.0).astype(np.float32))

    enc_out, enc_slf_attn = encoder_layer(
        enc_input, slf_attn_mask, non_pad_mask, params, n_head, d_k, d_v)
    jax.block_until_ready((enc_out, enc_slf_attn))

    out_ref, attn_ref = encoder_layer_ref(
        enc_input, slf_attn_mask, non_pad_mask, params, n_head, d_k, d_v)

    # bf16 matmul operands + approx reciprocal in the kernel vs f32 reference.
    np.testing.assert_allclose(np.asarray(enc_out), np.asarray(out_ref),
                               rtol=2e-2, atol=2e-2)
    np.testing.assert_allclose(np.asarray(enc_slf_attn), np.asarray(attn_ref),
                               rtol=2e-2, atol=2e-2)

    print("KERNEL_OK")
</pallas_src>

<mosaic_0001>
module attributes {stable_mosaic.version = 11 : i64} {
  func.func @encoder_layer_kernel(%arg0: i32, %arg1: memref<1x8x32xf32, #tpu.memory_space<vmem>>, %arg2: memref<1x8x8xf32, #tpu.memory_space<vmem>>, %arg3: memref<1x8x1xf32, #tpu.memory_space<vmem>>, %arg4: memref<4x32x8xbf16, #tpu.memory_space<vmem>>, %arg5: memref<4x32x8xbf16, #tpu.memory_space<vmem>>, %arg6: memref<4x32x8xbf16, #tpu.memory_space<vmem>>, %arg7: memref<4x8x32xbf16, #tpu.memory_space<vmem>>, %arg8: memref<1x32xf32, #tpu.memory_space<vmem>>, %arg9: memref<1x32xf32, #tpu.memory_space<vmem>>, %arg10: memref<1x32xf32, #tpu.memory_space<vmem>>, %arg11: memref<32x64xbf16, #tpu.memory_space<vmem>>, %arg12: memref<1x64xf32, #tpu.memory_space<vmem>>, %arg13: memref<64x32xbf16, #tpu.memory_space<vmem>>, %arg14: memref<1x32xf32, #tpu.memory_space<vmem>>, %arg15: memref<1x32xf32, #tpu.memory_space<vmem>>, %arg16: memref<1x32xf32, #tpu.memory_space<vmem>>, %arg17: memref<1x8x32xf32, #tpu.memory_space<vmem>>, %arg18: memref<1x4x8x8xf32, #tpu.memory_space<vmem>>) attributes {dimension_semantics = [#tpu.dimension_semantics<parallel>], iteration_bounds = array<i64: 2>, scalar_prefetch = 0 : i64, scratch_operands = 0 : i64, tpu.core_type = #tpu.core_type<tc>, window_params = [{transform_indices = @transform_0, window_bounds = array<i64: 1, 8, 32>}, {transform_indices = @transform_1, window_bounds = array<i64: 1, 8, 8>}, {transform_indices = @transform_2, window_bounds = array<i64: 1, 8, 1>}, {pipeline_mode = #tpu.pipeline_mode<synchronous>, transform_indices = @transform_3, window_bounds = array<i64: 4, 32, 8>}, {pipeline_mode = #tpu.pipeline_mode<synchronous>, transform_indices = @transform_4, window_bounds = array<i64: 4, 32, 8>}, {pipeline_mode = #tpu.pipeline_mode<synchronous>, transform_indices = @transform_5, window_bounds = array<i64: 4, 32, 8>}, {pipeline_mode = #tpu.pipeline_mode<synchronous>, transform_indices = @transform_6, window_bounds = array<i64: 4, 8, 32>}, {pipeline_mode = #tpu.pipeline_mode<synchronous>, transform_indices = @transform_7, window_bounds = array<i64: 1, 32>}, {pipeline_mode = #tpu.pipeline_mode<synchronous>, transform_indices = @transform_8, window_bounds = array<i64: 1, 32>}, {pipeline_mode = #tpu.pipeline_mode<synchronous>, transform_indices = @transform_9, window_bounds = array<i64: 1, 32>}, {pipeline_mode = #tpu.pipeline_mode<synchronous>, transform_indices = @transform_10, window_bounds = array<i64: 32, 64>}, {pipeline_mode = #tpu.pipeline_mode<synchronous>, transform_indices = @transform_11, window_bounds = array<i64: 1, 64>}, {pipeline_mode = #tpu.pipeline_mode<synchronous>, transform_indices = @transform_12, window_bounds = array<i64: 64, 32>}, {pipeline_mode = #tpu.pipeline_mode<synchronous>, transform_indices = @transform_13, window_bounds = array<i64: 1, 32>}, {pipeline_mode = #tpu.pipeline_mode<synchronous>, transform_indices = @transform_14, window_bounds = array<i64: 1, 32>}, {pipeline_mode = #tpu.pipeline_mode<synchronous>, transform_indices = @transform_15, window_bounds = array<i64: 1, 32>}, {transform_indices = @transform_16, window_bounds = array<i64: 1, 8, 32>}, {transform_indices = @transform_17, window_bounds = array<i64: 1, 4, 8, 8>}]} {
    %c0 = arith.constant 0 : index
    %c0_0 = arith.constant 0 : index
    %c0_1 = arith.constant 0 : index
    %0 = vector.load %arg1[%c0, %c0_0, %c0_1] : memref<1x8x32xf32, #tpu.memory_space<vmem>>, vector<1x8x32xf32>
    %1 = vector.shape_cast %0 : vector<1x8x32xf32> to vector<8x32xf32>
    %c0_2 = arith.constant 0 : index
    %c0_3 = arith.constant 0 : index
    %c0_4 = arith.constant 0 : index
    %2 = vector.load %arg2[%c0_2, %c0_3, %c0_4] : memref<1x8x8xf32, #tpu.memory_space<vmem>>, vector<1x8x8xf32>
    %3 = vector.shape_cast %2 : vector<1x8x8xf32> to vector<8x8xf32>
    %c0_5 = arith.constant 0 : index
    %c0_6 = arith.constant 0 : index
    %c0_7 = arith.constant 0 : index
    %4 = vector.load %arg3[%c0_5, %c0_6, %c0_7] : memref<1x8x1xf32, #tpu.memory_space<vmem>>, vector<1x8x1xf32>
    %5 = vector.shape_cast %4 : vector<1x8x1xf32> to vector<8x1xf32>
    %c0_8 = arith.constant 0 : index
    %c0_9 = arith.constant 0 : index
    %6 = vector.load %arg9[%c0_8, %c0_9] : memref<1x32xf32, #tpu.memory_space<vmem>>, vector<1x32xf32>
    %c0_10 = arith.constant 0 : index
    %c0_11 = arith.constant 0 : index
    %7 = vector.load %arg10[%c0_10, %c0_11] : memref<1x32xf32, #tpu.memory_space<vmem>>, vector<1x32xf32>
    %cst = arith.constant dense<0.000000e+00> : vector<8xf32>
    %8 = vector.multi_reduction <add>, %1, %cst [1] : vector<8x32xf32> to vector<8xf32>
    %9 = vector.shape_cast %8 : vector<8xf32> to vector<8x1xf32>
    %cst_12 = arith.constant 3.200000e+01 : f32
    %10 = vector.broadcast %cst_12 : f32 to vector<8x1xf32>
    %11 = arith.divf %9, %10 : vector<8x1xf32>
    %12 = vector.broadcast %11 : vector<8x1xf32> to vector<8x32xf32>
    %13 = arith.subf %1, %12 : vector<8x32xf32>
    %14 = arith.mulf %13, %13 : vector<8x32xf32>
    %cst_13 = arith.constant dense<0.000000e+00> : vector<8xf32>
    %15 = vector.multi_reduction <add>, %14, %cst_13 [1] : vector<8x32xf32> to vector<8xf32>
    %16 = vector.shape_cast %15 : vector<8xf32> to vector<8x1xf32>
    %cst_14 = arith.constant 3.200000e+01 : f32
    %17 = vector.broadcast %cst_14 : f32 to vector<8x1xf32>
    %18 = arith.divf %16, %17 : vector<8x1xf32>
    %19 = vector.broadcast %11 : vector<8x1xf32> to vector<8x32xf32>
    %20 = arith.subf %1, %19 : vector<8x32xf32>
    %cst_15 = arith.constant 9.99999997E-7 : f32
    %21 = vector.broadcast %cst_15 : f32 to vector<8x1xf32>
    %22 = arith.addf %18, %21 : vector<8x1xf32>
    %23 = math.rsqrt %22 : vector<8x1xf32>
    %24 = vector.broadcast %23 : vector<8x1xf32> to vector<8x32xf32>
    %25 = arith.mulf %20, %24 : vector<8x32xf32>
    %26 = vector.broadcast %6 : vector<1x32xf32> to vector<8x32xf32>
    %27 = arith.mulf %25, %26 : vector<8x32xf32>
    %28 = vector.broadcast %7 : vector<1x32xf32> to vector<8x32xf32>
    %29 = arith.addf %27, %28 : vector<8x32xf32>
    %30 = arith.truncf %29 : vector<8x32xf32> to vector<8x32xbf16>
    %31 = vector.shape_cast %30 : vector<8x32xbf16> to vector<1x8x32xbf16>
    %32 = vector.shape_cast %31 : vector<1x8x32xbf16> to vector<1x8x32xbf16>
    %33 = vector.broadcast %32 : vector<1x8x32xbf16> to vector<4x8x32xbf16>
    %c0_16 = arith.constant 0 : index
    %c0_17 = arith.constant 0 : index
    %c0_18 = arith.constant 0 : index
    %34 = vector.load %arg4[%c0_16, %c0_17, %c0_18] : memref<4x32x8xbf16, #tpu.memory_space<vmem>>, vector<4x32x8xbf16>
    "tpu.trace_start"() <{level = 10 : i32, message = "hld,hdk->hlk"}> : () -> ()
    %cst_19 = arith.constant dense<0.000000e+00> : vector<4x8x8xf32>
    %35 = tpu.matmul %33, %34, %cst_19 {dimension_numbers = #tpu.dot_dimension_numbers<[2], [1], [1], [2], [0, 0, 0, 1, 1, 2], [0], [0]>} : vector<4x8x32xbf16>, vector<4x32x8xbf16>, vector<4x8x8xf32> -> vector<4x8x8xf32>
    "tpu.trace_stop"() : () -> ()
    %c0_20 = arith.constant 0 : index
    %c0_21 = arith.constant 0 : index
    %c0_22 = arith.constant 0 : index
    %36 = vector.load %arg5[%c0_20, %c0_21, %c0_22] : memref<4x32x8xbf16, #tpu.memory_space<vmem>>, vector<4x32x8xbf16>
    "tpu.trace_start"() <{level = 10 : i32, message = "hld,hdk->hlk"}> : () -> ()
    %cst_23 = arith.constant dense<0.000000e+00> : vector<4x8x8xf32>
    %37 = tpu.matmul %33, %36, %cst_23 {dimension_numbers = #tpu.dot_dimension_numbers<[2], [1], [1], [2], [0, 0, 0, 1, 1, 2], [0], [0]>} : vector<4x8x32xbf16>, vector<4x32x8xbf16>, vector<4x8x8xf32> -> vector<4x8x8xf32>
    "tpu.trace_stop"() : () -> ()
    %c0_24 = arith.constant 0 : index
    %c0_25 = arith.constant 0 : index
    %c0_26 = arith.constant 0 : index
    %38 = vector.load %arg6[%c0_24, %c0_25, %c0_26] : memref<4x32x8xbf16, #tpu.memory_space<vmem>>, vector<4x32x8xbf16>
    "tpu.trace_start"() <{level = 10 : i32, message = "hld,hdv->hlv"}> : () -> ()
    %cst_27 = arith.constant dense<0.000000e+00> : vector<4x8x8xf32>
    %39 = tpu.matmul %33, %38, %cst_27 {dimension_numbers = #tpu.dot_dimension_numbers<[2], [1], [1], [2], [0, 0, 0, 1, 1, 2], [0], [0]>} : vector<4x8x32xbf16>, vector<4x32x8xbf16>, vector<4x8x8xf32> -> vector<4x8x8xf32>
    "tpu.trace_stop"() : () -> ()
    %cst_28 = arith.constant 0.353553385 : f32
    %40 = vector.broadcast %cst_28 : f32 to vector<4x8x8xf32>
    %41 = arith.mulf %35, %40 : vector<4x8x8xf32>
    %42 = arith.truncf %41 : vector<4x8x8xf32> to vector<4x8x8xbf16>
    %43 = arith.truncf %37 : vector<4x8x8xf32> to vector<4x8x8xbf16>
    "tpu.trace_start"() <{level = 10 : i32, message = "hqd,hkd->hqk"}> : () -> ()
    %cst_29 = arith.constant dense<0.000000e+00> : vector<4x8x8xf32>
    %44 = tpu.matmul %42, %43, %cst_29 {dimension_numbers = #tpu.dot_dimension_numbers<[2], [2], [1], [1], [0, 0, 0, 1, 1, 1], [0], [0]>} : vector<4x8x8xbf16>, vector<4x8x8xbf16>, vector<4x8x8xf32> -> vector<4x8x8xf32>
    %cst_30 = arith.constant 5.000000e-01 : f32
    "tpu.trace_stop"() : () -> ()
    %45 = vector.broadcast %cst_30 : f32 to vector<8x8xf32>
    %46 = arith.cmpf ogt, %3, %45 : vector<8x8xf32>
    %cst_31 = arith.constant -1.000000e+09 : f32
    %cst_32 = arith.constant 0.000000e+00 : f32
    %47 = vector.broadcast %cst_31 : f32 to vector<8x8xf32>
    %48 = vector.broadcast %cst_32 : f32 to vector<8x8xf32>
    %49 = arith.select %46, %47, %48 : vector<8x8xi1>, vector<8x8xf32>
    %50 = vector.shape_cast %49 : vector<8x8xf32> to vector<1x8x8xf32>
    %51 = vector.broadcast %50 : vector<1x8x8xf32> to vector<4x8x8xf32>
    %52 = arith.addf %44, %51 : vector<4x8x8xf32>
    %cst_33 = arith.constant dense<0xFF800000> : vector<4x8xf32>
    %53 = vector.multi_reduction <maximumf>, %52, %cst_33 [2] : vector<4x8x8xf32> to vector<4x8xf32>
    %54 = vector.shape_cast %53 : vector<4x8xf32> to vector<4x8x1xf32>
    %55 = vector.broadcast %54 : vector<4x8x1xf32> to vector<4x8x8xf32>
    %56 = arith.subf %52, %55 : vector<4x8x8xf32>
    %57 = math.exp %56 : vector<4x8x8xf32>
    %cst_34 = arith.constant dense<0.000000e+00> : vector<4x8xf32>
    %58 = vector.multi_reduction <add>, %57, %cst_34 [2] : vector<4x8x8xf32> to vector<4x8xf32>
    %59 = vector.shape_cast %58 : vector<4x8xf32> to vector<4x8x1xf32>
    %60 = tpu.reciprocal %59 {approx = true} : vector<4x8x1xf32> -> vector<4x8x1xf32>
    %61 = vector.broadcast %60 : vector<4x8x1xf32> to vector<4x8x8xf32>
    %62 = arith.mulf %57, %61 : vector<4x8x8xf32>
    %c0_35 = arith.constant 0 : index
    %c0_36 = arith.constant 0 : index
    %c0_37 = arith.constant 0 : index
    %c0_38 = arith.constant 0 : index
    %63 = vector.load %arg18[%c0_35, %c0_36, %c0_37, %c0_38] : memref<1x4x8x8xf32, #tpu.memory_space<vmem>>, vector<1x4x8x8xf32>
    %64 = vector.shape_cast %63 : vector<1x4x8x8xf32> to vector<4x8x8xf32>
    %65 = vector.shape_cast %62 : vector<4x8x8xf32> to vector<1x4x8x8xf32>
    tpu.vector_store %arg18[%c0_35, %c0_36, %c0_37, %c0_38], %65 {strides = array<i32>} : memref<1x4x8x8xf32, #tpu.memory_space<vmem>>, vector<1x4x8x8xf32>,
    %66 = arith.truncf %62 : vector<4x8x8xf32> to vector<4x8x8xbf16>
    %67 = arith.truncf %39 : vector<4x8x8xf32> to vector<4x8x8xbf16>
    "tpu.trace_start"() <{level = 10 : i32, message = "hqk,hkv->hqv"}> : () -> ()
    %cst_39 = arith.constant dense<0.000000e+00> : vector<4x8x8xf32>
    %68 = tpu.matmul %66, %67, %cst_39 {dimension_numbers = #tpu.dot_dimension_numbers<[2], [1], [1], [2], [0, 0, 0, 1, 1, 2], [0], [0]>} : vector<4x8x8xbf16>, vector<4x8x8xbf16>, vector<4x8x8xf32> -> vector<4x8x8xf32>
    "tpu.trace_stop"() : () -> ()
    %69 = arith.truncf %68 : vector<4x8x8xf32> to vector<4x8x8xbf16>
    %c0_40 = arith.constant 0 : index
    %c0_41 = arith.constant 0 : index
    %c0_42 = arith.constant 0 : index
    %70 = vector.load %arg7[%c0_40, %c0_41, %c0_42] : memref<4x8x32xbf16, #tpu.memory_space<vmem>>, vector<4x8x32xbf16>
    "tpu.trace_start"() <{level = 10 : i32, message = "hqv,hvd->hqd"}> : () -> ()
    %cst_43 = arith.constant dense<0.000000e+00> : vector<4x8x32xf32>
    %71 = tpu.matmul %69, %70, %cst_43 {dimension_numbers = #tpu.dot_dimension_numbers<[2], [1], [1], [2], [0, 0, 0, 1, 1, 2], [0], [0]>} : vector<4x8x8xbf16>, vector<4x8x32xbf16>, vector<4x8x32xf32> -> vector<4x8x32xf32>
    "tpu.trace_stop"() : () -> ()
    %cst_44 = arith.constant dense<0.000000e+00> : vector<8x32xf32>
    %72 = vector.multi_reduction <add>, %71, %cst_44 [0] : vector<4x8x32xf32> to vector<8x32xf32>
    %c0_45 = arith.constant 0 : index
    %c0_46 = arith.constant 0 : index
    %73 = vector.load %arg8[%c0_45, %c0_46] : memref<1x32xf32, #tpu.memory_space<vmem>>, vector<1x32xf32>
    %74 = vector.broadcast %73 : vector<1x32xf32> to vector<8x32xf32>
    %75 = arith.addf %72, %74 : vector<8x32xf32>
    %76 = arith.addf %75, %1 : vector<8x32xf32>
    %77 = vector.broadcast %5 : vector<8x1xf32> to vector<8x32xf32>
    %78 = arith.mulf %76, %77 : vector<8x32xf32>
    %c0_47 = arith.constant 0 : index
    %c0_48 = arith.constant 0 : index
    %79 = vector.load %arg15[%c0_47, %c0_48] : memref<1x32xf32, #tpu.memory_space<vmem>>, vector<1x32xf32>
    %c0_49 = arith.constant 0 : index
    %c0_50 = arith.constant 0 : index
    %80 = vector.load %arg16[%c0_49, %c0_50] : memref<1x32xf32, #tpu.memory_space<vmem>>, vector<1x32xf32>
    %cst_51 = arith.constant dense<0.000000e+00> : vector<8xf32>
    %81 = vector.multi_reduction <add>, %78, %cst_51 [1] : vector<8x32xf32> to vector<8xf32>
    %82 = vector.shape_cast %81 : vector<8xf32> to vector<8x1xf32>
    %cst_52 = arith.constant 3.200000e+01 : f32
    %83 = vector.broadcast %cst_52 : f32 to vector<8x1xf32>
    %84 = arith.divf %82, %83 : vector<8x1xf32>
    %85 = vector.broadcast %84 : vector<8x1xf32> to vector<8x32xf32>
    %86 = arith.subf %78, %85 : vector<8x32xf32>
    %87 = arith.mulf %86, %86 : vector<8x32xf32>
    %cst_53 = arith.constant dense<0.000000e+00> : vector<8xf32>
    %88 = vector.multi_reduction <add>, %87, %cst_53 [1] : vector<8x32xf32> to vector<8xf32>
    %89 = vector.shape_cast %88 : vector<8xf32> to vector<8x1xf32>
    %cst_54 = arith.constant 3.200000e+01 : f32
    %90 = vector.broadcast %cst_54 : f32 to vector<8x1xf32>
    %91 = arith.divf %89, %90 : vector<8x1xf32>
    %92 = vector.broadcast %84 : vector<8x1xf32> to vector<8x32xf32>
    %93 = arith.subf %78, %92 : vector<8x32xf32>
    %cst_55 = arith.constant 9.99999997E-7 : f32
    %94 = vector.broadcast %cst_55 : f32 to vector<8x1xf32>
    %95 = arith.addf %91, %94 : vector<8x1xf32>
    %96 = math.rsqrt %95 : vector<8x1xf32>
    %97 = vector.broadcast %96 : vector<8x1xf32> to vector<8x32xf32>
    %98 = arith.mulf %93, %97 : vector<8x32xf32>
    %99 = vector.broadcast %79 : vector<1x32xf32> to vector<8x32xf32>
    %100 = arith.mulf %98, %99 : vector<8x32xf32>
    %101 = vector.broadcast %80 : vector<1x32xf32> to vector<8x32xf32>
    %102 = arith.addf %100, %101 : vector<8x32xf32>
    %103 = arith.truncf %102 : vector<8x32xf32> to vector<8x32xbf16>
    %c0_56 = arith.constant 0 : index
    %c0_57 = arith.constant 0 : index
    %104 = vector.load %arg11[%c0_56, %c0_57] : memref<32x64xbf16, #tpu.memory_space<vmem>>, vector<32x64xbf16>
    %cst_58 = arith.constant dense<0.000000e+00> : vector<8x64xf32>
    %105 = tpu.matmul %103, %104, %cst_58 {dimension_numbers = #tpu.dot_dimension_numbers<[1], [0], [0], [1], [0, 0, 1, 1], [], []>} : vector<8x32xbf16>, vector<32x64xbf16>, vector<8x64xf32> -> vector<8x64xf32>
    %c0_59 = arith.constant 0 : index
    %c0_60 = arith.constant 0 : index
    %106 = vector.load %arg12[%c0_59, %c0_60] : memref<1x64xf32, #tpu.memory_space<vmem>>, vector<1x64xf32>
    %107 = vector.broadcast %106 : vector<1x64xf32> to vector<8x64xf32>
    %108 = arith.addf %105, %107 : vector<8x64xf32>
    %cst_61 = arith.constant 5.000000e-01 : f32
    %109 = vector.broadcast %cst_61 : f32 to vector<8x64xf32>
    %110 = arith.mulf %109, %108 : vector<8x64xf32>
    %cst_62 = arith.constant 4.471500e-02 : f32
    %111 = vector.broadcast %cst_62 : f32 to vector<8x64xf32>
    %112 = arith.mulf %111, %108 : vector<8x64xf32>
    %113 = arith.mulf %112, %108 : vector<8x64xf32>
    %114 = arith.mulf %113, %108 : vector<8x64xf32>
    %115 = arith.addf %108, %114 : vector<8x64xf32>
    %cst_63 = arith.constant 0.797884583 : f32
    %116 = vector.broadcast %cst_63 : f32 to vector<8x64xf32>
    %117 = arith.mulf %116, %115 : vector<8x64xf32>
    %118 = math.tanh %117 : vector<8x64xf32>
    %cst_64 = arith.constant 1.000000e+00 : f32
    %119 = vector.broadcast %cst_64 : f32 to vector<8x64xf32>
    %120 = arith.addf %119, %118 : vector<8x64xf32>
    %121 = arith.mulf %110, %120 : vector<8x64xf32>
    %122 = arith.truncf %121 : vector<8x64xf32> to vector<8x64xbf16>
    %c0_65 = arith.constant 0 : index
    %c0_66 = arith.constant 0 : index
    %123 = vector.load %arg13[%c0_65, %c0_66] : memref<64x32xbf16, #tpu.memory_space<vmem>>, vector<64x32xbf16>
    %cst_67 = arith.constant dense<0.000000e+00> : vector<8x32xf32>
    %124 = tpu.matmul %122, %123, %cst_67 {dimension_numbers = #tpu.dot_dimension_numbers<[1], [0], [0], [1], [0, 0, 1, 1], [], []>} : vector<8x64xbf16>, vector<64x32xbf16>, vector<8x32xf32> -> vector<8x32xf32>
    %c0_68 = arith.constant 0 : index
    %c0_69 = arith.constant 0 : index
    %125 = vector.load %arg14[%c0_68, %c0_69] : memref<1x32xf32, #tpu.memory_space<vmem>>, vector<1x32xf32>
    %126 = vector.broadcast %125 : vector<1x32xf32> to vector<8x32xf32>
    %127 = arith.addf %124, %126 : vector<8x32xf32>
    %128 = arith.addf %127, %78 : vector<8x32xf32>
    %129 = vector.broadcast %5 : vector<8x1xf32> to vector<8x32xf32>
    %130 = arith.mulf %128, %129 : vector<8x32xf32>
    %c0_70 = arith.constant 0 : index
    %c0_71 = arith.constant 0 : index
    %c0_72 = arith.constant 0 : index
    %131 = vector.load %arg17[%c0_70, %c0_71, %c0_72] : memref<1x8x32xf32, #tpu.memory_space<vmem>>, vector<1x8x32xf32>
    %132 = vector.shape_cast %131 : vector<1x8x32xf32> to vector<8x32xf32>
    %133 = vector.shape_cast %130 : vector<8x32xf32> to vector<1x8x32xf32>
    tpu.vector_store %arg17[%c0_70, %c0_71, %c0_72], %133 {strides = array<i32>} : memref<1x8x32xf32, #tpu.memory_space<vmem>>, vector<1x8x32xf32>,
    return
  }
  func.func @transform_0(%arg0: i32) -> (i32, i32, i32) {
    %c0_i32 = arith.constant 0 : i32
    %c0_i32_0 = arith.constant 0 : i32
    %c0_i32_1 = arith.constant 0 : i32
    return %arg0, %c0_i32, %c0_i32_0 : i32, i32, i32
  }
  func.func @transform_1(%arg0: i32) -> (i32, i32, i32) {
    %c0_i32 = arith.constant 0 : i32
    %c0_i32_0 = arith.constant 0 : i32
    %c0_i32_1 = arith.constant 0 : i32
    return %arg0, %c0_i32, %c0_i32_0 : i32, i32, i32
  }
  func.func @transform_2(%arg0: i32) -> (i32, i32, i32) {
    %c0_i32 = arith.constant 0 : i32
    %c0_i32_0 = arith.constant 0 : i32
    %c0_i32_1 = arith.constant 0 : i32
    return %arg0, %c0_i32, %c0_i32_0 : i32, i32, i32
  }
  func.func @transform_3(%arg0: i32) -> (i32, i32, i32) {
    %c0_i32 = arith.constant 0 : i32
    %c0_i32_0 = arith.constant 0 : i32
    %c0_i32_1 = arith.constant 0 : i32
    %c0_i32_2 = arith.constant 0 : i32
    return %c0_i32, %c0_i32_0, %c0_i32_1 : i32, i32, i32
  }
  func.func @transform_4(%arg0: i32) -> (i32, i32, i32) {
    %c0_i32 = arith.constant 0 : i32
    %c0_i32_0 = arith.constant 0 : i32
    %c0_i32_1 = arith.constant 0 : i32
    %c0_i32_2 = arith.constant 0 : i32
    return %c0_i32, %c0_i32_0, %c0_i32_1 : i32, i32, i32
  }
  func.func @transform_5(%arg0: i32) -> (i32, i32, i32) {
    %c0_i32 = arith.constant 0 : i32
    %c0_i32_0 = arith.constant 0 : i32
    %c0_i32_1 = arith.constant 0 : i32
    %c0_i32_2 = arith.constant 0 : i32
    return %c0_i32, %c0_i32_0, %c0_i32_1 : i32, i32, i32
  }
  func.func @transform_6(%arg0: i32) -> (i32, i32, i32) {
    %c0_i32 = arith.constant 0 : i32
    %c0_i32_0 = arith.constant 0 : i32
    %c0_i32_1 = arith.constant 0 : i32
    %c0_i32_2 = arith.constant 0 : i32
    return %c0_i32, %c0_i32_0, %c0_i32_1 : i32, i32, i32
  }
  func.func @transform_7(%arg0: i32) -> (i32, i32) {
    %c0_i32 = arith.constant 0 : i32
    %c0_i32_0 = arith.constant 0 : i32
    %c0_i32_1 = arith.constant 0 : i32
    return %c0_i32, %c0_i32_0 : i32, i32
  }
  func.func @transform_8(%arg0: i32) -> (i32, i32) {
    %c0_i32 = arith.constant 0 : i32
    %c0_i32_0 = arith.constant 0 : i32
    %c0_i32_1 = arith.constant 0 : i32
    return %c0_i32, %c0_i32_0 : i32, i32
  }
  func.func @transform_9(%arg0: i32) -> (i32, i32) {
    %c0_i32 = arith.constant 0 : i32
    %c0_i32_0 = arith.constant 0 : i32
    %c0_i32_1 = arith.constant 0 : i32
    return %c0_i32, %c0_i32_0 : i32, i32
  }
  func.func @transform_10(%arg0: i32) -> (i32, i32) {
    %c0_i32 = arith.constant 0 : i32
    %c0_i32_0 = arith.constant 0 : i32
    %c0_i32_1 = arith.constant 0 : i32
    return %c0_i32, %c0_i32_0 : i32, i32
  }
  func.func @transform_11(%arg0: i32) -> (i32, i32) {
    %c0_i32 = arith.constant 0 : i32
    %c0_i32_0 = arith.constant 0 : i32
    %c0_i32_1 = arith.constant 0 : i32
    return %c0_i32, %c0_i32_0 : i32, i32
  }
  func.func @transform_12(%arg0: i32) -> (i32, i32) {
    %c0_i32 = arith.constant 0 : i32
    %c0_i32_0 = arith.constant 0 : i32
    %c0_i32_1 = arith.constant 0 : i32
    return %c0_i32, %c0_i32_0 : i32, i32
  }
  func.func @transform_13(%arg0: i32) -> (i32, i32) {
    %c0_i32 = arith.constant 0 : i32
    %c0_i32_0 = arith.constant 0 : i32
    %c0_i32_1 = arith.constant 0 : i32
    return %c0_i32, %c0_i32_0 : i32, i32
  }
  func.func @transform_14(%arg0: i32) -> (i32, i32) {
    %c0_i32 = arith.constant 0 : i32
    %c0_i32_0 = arith.constant 0 : i32
    %c0_i32_1 = arith.constant 0 : i32
    return %c0_i32, %c0_i32_0 : i32, i32
  }
  func.func @transform_15(%arg0: i32) -> (i32, i32) {
    %c0_i32 = arith.constant 0 : i32
    %c0_i32_0 = arith.constant 0 : i32
    %c0_i32_1 = arith.constant 0 : i32
    return %c0_i32, %c0_i32_0 : i32, i32
  }
  func.func @transform_16(%arg0: i32) -> (i32, i32, i32) {
    %c0_i32 = arith.constant 0 : i32
    %c0_i32_0 = arith.constant 0 : i32
    %c0_i32_1 = arith.constant 0 : i32
    return %arg0, %c0_i32, %c0_i32_0 : i32, i32, i32
  }
  func.func @transform_17(%arg0: i32) -> (i32, i32, i32, i32) {
    %c0_i32 = arith.constant 0 : i32
    %c0_i32_0 = arith.constant 0 : i32
    %c0_i32_1 = arith.constant 0 : i32
    %c0_i32_2 = arith.constant 0 : i32
    return %arg0, %c0_i32, %c0_i32_0, %c0_i32_1 : i32, i32, i32, i32
  }
}

</mosaic_0001>

<llo_original>
// kernel: tpu_custom_call.1
$region0: #{tpu_custom_call.1}
  #allocation0 [shape = 'u32[]', space=smem, size = 0x4, offset = 0x4, fixed_abs, tag = 'smem constant byte address 0x4 - core index']
  #allocation1 [shape = 'u32[72,128]{1,0:T(1,128)}', space=vmem, size = 0x9000, scoped, tag = 'internal scratch']
  %s0 = inlined_call_operand.vmem [shape: f32[2,8,32], index: 0, kind: input, shape index: {}]
  %s1 = inlined_call_operand.vmem [shape: f32[2,8,8], index: 1, kind: input, shape index: {}]
  %s2 = inlined_call_operand.vmem [shape: f32[2,8,1], index: 2, kind: input, shape index: {}]
  %s3 = inlined_call_operand.vmem [shape: bf16[4,32,8], index: 3, kind: input, shape index: {}]
  %s4 = inlined_call_operand.vmem [shape: bf16[4,32,8], index: 4, kind: input, shape index: {}]
  %s5 = inlined_call_operand.vmem [shape: bf16[4,32,8], index: 5, kind: input, shape index: {}]
  %s6 = inlined_call_operand.vmem [shape: bf16[4,8,32], index: 6, kind: input, shape index: {}]
  %s7 = inlined_call_operand.vmem [shape: f32[1,32], index: 7, kind: input, shape index: {}]
  %s8 = inlined_call_operand.vmem [shape: f32[1,32], index: 8, kind: input, shape index: {}]
  %s9 = inlined_call_operand.vmem [shape: f32[1,32], index: 9, kind: input, shape index: {}]
  %s10 = inlined_call_operand.vmem [shape: bf16[32,64], index: 10, kind: input, shape index: {}]
  %s11 = inlined_call_operand.vmem [shape: f32[1,64], index: 11, kind: input, shape index: {}]
  %s12 = inlined_call_operand.vmem [shape: bf16[64,32], index: 12, kind: input, shape index: {}]
  %s13 = inlined_call_operand.vmem [shape: f32[1,32], index: 13, kind: input, shape index: {}]
  %s14 = inlined_call_operand.vmem [shape: f32[1,32], index: 14, kind: input, shape index: {}]
  %s15 = inlined_call_operand.vmem [shape: f32[1,32], index: 15, kind: input, shape index: {}]
  %s16 = inlined_call_operand.hbm [shape: f32[2,8,32], index: 16, kind: output, shape index: {0}]
  %s17 = inlined_call_operand.hbm [shape: f32[2,4,8,8], index: 17, kind: output, shape index: {1}]
  %18 = xla_tuple %s16, %s17
  %s19 = sld [smem:[#allocation0]]
  $region105: #{tpu_custom_call.1} parent=0
    _
  %s21 = ssub.s32 1, %s19
  %s22 = scalar_select 0, %s21, %s19
  $region1: #{tpu_custom_call.1} parent=0
    #allocation2 [shape = 'u8[8192]{0}', space=vmem, size = 0x2000, scoped, tag = 'output window, operand 0']
    #allocation3 [shape = 's32[2]{0}', space=sflag, size = 0x8, scoped, tag = 'scoped memory for tpu_custom_call.1']
    #allocation4 [shape = 'u8[32768]{0}', space=vmem, size = 0x8000, scoped, tag = 'output window, operand 1']
    #allocation5 [shape = 's32[2]{0}', space=sflag, size = 0x8, scoped, tag = 'scoped memory for tpu_custom_call.1']
    %23 = vsyncpa [#allocation3], 0
    %s24 = scalar_lea.sflag [#allocation3], 1
    %25 = vsyncpa %s24, 0
    %26 = vsyncpa [#allocation5], 0
    %s27 = scalar_lea.sflag [#allocation5], 1
    %28 = vsyncpa %s27, 0
    loop: start=0, step=1, limit=4
    $region2: #{tpu_custom_call.1} parent=1 // loop_pre_header
      _
    $region3: #{tpu_custom_call.1} parent=1 // loop_header
      %s30 = sphi 0, %s34
      %p31 = scmp.ge.s32.totalorder %s30, 4
      %s40 = sphi 0, %s42
      %s43 = sphi 0, %s40
      %s44 = sphi 0, %s43
      %s60 = sphi 0, %s44
      %s66 = sphi 0, %s68
      %s69 = sphi 0, %s66
      %s70 = sphi 0, %s69
      %s86 = sphi 0, %s70
      %s92 = sphi 0, %s94
      %s95 = sphi 0, %s92
      %s96 = sphi 0, %s95
      %s112 = sphi 0, %s96
      %s116 = sphi 0, %s116
      %s118 = sphi 0, %s116
      %s119 = sphi 0, %s118
      %s133 = sphi 0, %s119
      %s137 = sphi 0, %s137
      %s139 = sphi 0, %s137
      %s140 = sphi 0, %s139
      %s154 = sphi 0, %s140
      %s158 = sphi 0, %s158
      %s160 = sphi 0, %s158
      %s161 = sphi 0, %s160
      %s175 = sphi 0, %s161
      %s179 = sphi 0, %s179
      %s181 = sphi 0, %s179
      %s182 = sphi 0, %s181
      %s196 = sphi 0, %s182
      %s200 = sphi 0, %s200
      %s202 = sphi 0, %s200
      %s203 = sphi 0, %s202
      %s217 = sphi 0, %s203
      %s221 = sphi 0, %s221
      %s223 = sphi 0, %s221
      %s224 = sphi 0, %s223
      %s238 = sphi 0, %s224
      %s242 = sphi 0, %s242
      %s244 = sphi 0, %s242
      %s245 = sphi 0, %s244
      %s259 = sphi 0, %s245
      %s263 = sphi 0, %s263
      %s265 = sphi 0, %s263
      %s266 = sphi 0, %s265
      %s280 = sphi 0, %s266
      %s284 = sphi 0, %s284
      %s286 = sphi 0, %s284
      %s287 = sphi 0, %s286
      %s301 = sphi 0, %s287
      %s305 = sphi 0, %s305
      %s307 = sphi 0, %s305
      %s308 = sphi 0, %s307
      %s322 = sphi 0, %s308
      %s326 = sphi 0, %s326
      %s328 = sphi 0, %s326
      %s329 = sphi 0, %s328
      %s343 = sphi 0, %s329
      %s347 = sphi 0, %s347
      %s349 = sphi 0, %s347
      %s350 = sphi 0, %s349
      %s364 = sphi 0, %s350
      %s368 = sphi 0, %s368
      %s370 = sphi 0, %s368
      %s371 = sphi 0, %s370
      %s385 = sphi 0, %s371
      %s391 = sphi 0, %s393
      %s394 = sphi 0, %s391
      %s395 = sphi 0, %s394
      %s411 = sphi 0, %s395
      %s417 = sphi 0, %s419
      %s420 = sphi 0, %s417
      %s421 = sphi 0, %s420
      %s437 = sphi 0, %s421
    $region4: #{tpu_custom_call.1} parent=1 // loop_header_branch
      %33 = sbr.rel (%p31) target = $region8
    $region5: #{tpu_custom_call.1} parent=1 // loop_body
      %s35 = ssub.s32 %s30, 1
      %s36 = ssub.s32 %s30, 2
      %s37 = sadd.s32 %s30, 1
      %s38 = ssub.s32 %s30, %s37
      %p39 = scmp.eq.s32.totalorder %s38, 0
      %s41 = sadd.s32 %s40, 1
      %s42 = scalar_select %p39, %s40, %s41
      %p45 = pneg %p39
      %p46 = scmp.eq.s32.totalorder %s30, 1
      %p47 = por %p45, %p46
      %p48 = scmp.ne.s32.totalorder %s40, %s43
      %p49 = scmp.eq.s32.totalorder %s30, 0
      %p50 = por %p48, %p49
      %p51 = scmp.ne.s32.totalorder %s40, %s43
      %p52 = scmp.eq.s32.totalorder %s35, 1
      %p53 = por %p51, %p52
      %p54 = scmp.ne.s32.totalorder %s43, %s44
      %p55 = scmp.eq.s32.totalorder %s35, 0
      %p56 = por %p54, %p55
      %p57 = scmp.ne.s32.totalorder %s43, %s44
      %p58 = scmp.eq.s32.totalorder %s36, 1
      %p59 = por %p57, %p58
      %p61 = scmp.ne.s32.totalorder %s44, %s60
      %p62 = scmp.eq.s32.totalorder %s36, 0
      %p63 = por %p61, %p62
      %s64 = ssub.s32 %s30, %s37
      %p65 = scmp.eq.s32.totalorder %s64, 0
      %s67 = sadd.s32 %s66, 1
      %s68 = scalar_select %p65, %s66, %s67
      %p71 = pneg %p65
      %p72 = scmp.eq.s32.totalorder %s30, 1
      %p73 = por %p71, %p72
      %p74 = scmp.ne.s32.totalorder %s66, %s69
      %p75 = scmp.eq.s32.totalorder %s30, 0
      %p76 = por %p74, %p75
      %p77 = scmp.ne.s32.totalorder %s66, %s69
      %p78 = scmp.eq.s32.totalorder %s35, 1
      %p79 = por %p77, %p78
      %p80 = scmp.ne.s32.totalorder %s69, %s70
      %p81 = scmp.eq.s32.totalorder %s35, 0
      %p82 = por %p80, %p81
      %p83 = scmp.ne.s32.totalorder %s69, %s70
      %p84 = scmp.eq.s32.totalorder %s36, 1
      %p85 = por %p83, %p84
      %p87 = scmp.ne.s32.totalorder %s70, %s86
      %p88 = scmp.eq.s32.totalorder %s36, 0
      %p89 = por %p87, %p88
      %s90 = ssub.s32 %s30, %s37
      %p91 = scmp.eq.s32.totalorder %s90, 0
      %s93 = sadd.s32 %s92, 1
      %s94 = scalar_select %p91, %s92, %s93
      %p97 = pneg %p91
      %p98 = scmp.eq.s32.totalorder %s30, 1
      %p99 = por %p97, %p98
      %p100 = scmp.ne.s32.totalorder %s92, %s95
      %p101 = scmp.eq.s32.totalorder %s30, 0
      %p102 = por %p100, %p101
      %p103 = scmp.ne.s32.totalorder %s92, %s95
      %p104 = scmp.eq.s32.totalorder %s35, 1
      %p105 = por %p103, %p104
      %p106 = scmp.ne.s32.totalorder %s95, %s96
      %p107 = scmp.eq.s32.totalorder %s35, 0
      %p108 = por %p106, %p107
      %p109 = scmp.ne.s32.totalorder %s95, %s96
      %p110 = scmp.eq.s32.totalorder %s36, 1
      %p111 = por %p109, %p110
      %p113 = scmp.ne.s32.totalorder %s96, %s112
      %p114 = scmp.eq.s32.totalorder %s36, 0
      %p115 = por %p113, %p114
      %s117 = sadd.s32 %s116, 1
      %p120 = scmp.eq.s32.totalorder %s30, 1
      %p121 = scmp.ne.s32.totalorder %s116, %s118
      %p122 = scmp.eq.s32.totalorder %s30, 0
      %p123 = por %p121, %p122
      %p124 = scmp.ne.s32.totalorder %s116, %s118
      %p125 = scmp.eq.s32.totalorder %s35, 1
      %p126 = por %p124, %p125
      %p127 = scmp.ne.s32.totalorder %s118, %s119
      %p128 = scmp.eq.s32.totalorder %s35, 0
      %p129 = por %p127, %p128
      %p130 = scmp.ne.s32.totalorder %s118, %s119
      %p131 = scmp.eq.s32.totalorder %s36, 1
      %p132 = por %p130, %p131
      %p134 = scmp.ne.s32.totalorder %s119, %s133
      %p135 = scmp.eq.s32.totalorder %s36, 0
      %p136 = por %p134, %p135
      %s138 = sadd.s32 %s137, 1
      %p141 = scmp.eq.s32.totalorder %s30, 1
      %p142 = scmp.ne.s32.totalorder %s137, %s139
      %p143 = scmp.eq.s32.totalorder %s30, 0
      %p144 = por %p142, %p143
      %p145 = scmp.ne.s32.totalorder %s137, %s139
      %p146 = scmp.eq.s32.totalorder %s35, 1
      %p147 = por %p145, %p146
      %p148 = scmp.ne.s32.totalorder %s139, %s140
      %p149 = scmp.eq.s32.totalorder %s35, 0
      %p150 = por %p148, %p149
      %p151 = scmp.ne.s32.totalorder %s139, %s140
      %p152 = scmp.eq.s32.totalorder %s36, 1
      %p153 = por %p151, %p152
      %p155 = scmp.ne.s32.totalorder %s140, %s154
      %p156 = scmp.eq.s32.totalorder %s36, 0
      %p157 = por %p155, %p156
      %s159 = sadd.s32 %s158, 1
      %p162 = scmp.eq.s32.totalorder %s30, 1
      %p163 = scmp.ne.s32.totalorder %s158, %s160
      %p164 = scmp.eq.s32.totalorder %s30, 0
      %p165 = por %p163, %p164
      %p166 = scmp.ne.s32.totalorder %s158, %s160
      %p167 = scmp.eq.s32.totalorder %s35, 1
      %p168 = por %p166, %p167
      %p169 = scmp.ne.s32.totalorder %s160, %s161
      %p170 = scmp.eq.s32.totalorder %s35, 0
      %p171 = por %p169, %p170
      %p172 = scmp.ne.s32.totalorder %s160, %s161
      %p173 = scmp.eq.s32.totalorder %s36, 1
      %p174 = por %p172, %p173
      %p176 = scmp.ne.s32.totalorder %s161, %s175
      %p177 = scmp.eq.s32.totalorder %s36, 0
      %p178 = por %p176, %p177
      %s180 = sadd.s32 %s179, 1
      %p183 = scmp.eq.s32.totalorder %s30, 1
      %p184 = scmp.ne.s32.totalorder %s179, %s181
      %p185 = scmp.eq.s32.totalorder %s30, 0
      %p186 = por %p184, %p185
      %p187 = scmp.ne.s32.totalorder %s179, %s181
      %p188 = scmp.eq.s32.totalorder %s35, 1
      %p189 = por %p187, %p188
      %p190 = scmp.ne.s32.totalorder %s181, %s182
      %p191 = scmp.eq.s32.totalorder %s35, 0
      %p192 = por %p190, %p191
      %p193 = scmp.ne.s32.totalorder %s181, %s182
      %p194 = scmp.eq.s32.totalorder %s36, 1
      %p195 = por %p193, %p194
      %p197 = scmp.ne.s32.totalorder %s182, %s196
      %p198 = scmp.eq.s32.totalorder %s36, 0
      %p199 = por %p197, %p198
      %s201 = sadd.s32 %s200, 1
      %p204 = scmp.eq.s32.totalorder %s30, 1
      %p205 = scmp.ne.s32.totalorder %s200, %s202
      %p206 = scmp.eq.s32.totalorder %s30, 0
      %p207 = por %p205, %p206
      %p208 = scmp.ne.s32.totalorder %s200, %s202
      %p209 = scmp.eq.s32.totalorder %s35, 1
      %p210 = por %p208, %p209
      %p211 = scmp.ne.s32.totalorder %s202, %s203
      %p212 = scmp.eq.s32.totalorder %s35, 0
      %p213 = por %p211, %p212
      %p214 = scmp.ne.s32.totalorder %s202, %s203
      %p215 = scmp.eq.s32.totalorder %s36, 1
      %p216 = por %p214, %p215
      %p218 = scmp.ne.s32.totalorder %s203, %s217
      %p219 = scmp.eq.s32.totalorder %s36, 0
      %p220 = por %p218, %p219
      %s222 = sadd.s32 %s221, 1
      %p225 = scmp.eq.s32.totalorder %s30, 1
      %p226 = scmp.ne.s32.totalorder %s221, %s223
      %p227 = scmp.eq.s32.totalorder %s30, 0
      %p228 = por %p226, %p227
      %p229 = scmp.ne.s32.totalorder %s221, %s223
      %p230 = scmp.eq.s32.totalorder %s35, 1
      %p231 = por %p229, %p230
      %p232 = scmp.ne.s32.totalorder %s223, %s224
      %p233 = scmp.eq.s32.totalorder %s35, 0
      %p234 = por %p232, %p233
      %p235 = scmp.ne.s32.totalorder %s223, %s224
      %p236 = scmp.eq.s32.totalorder %s36, 1
      %p237 = por %p235, %p236
      %p239 = scmp.ne.s32.totalorder %s224, %s238
      %p240 = scmp.eq.s32.totalorder %s36, 0
      %p241 = por %p239, %p240
      %s243 = sadd.s32 %s242, 1
      %p246 = scmp.eq.s32.totalorder %s30, 1
      %p247 = scmp.ne.s32.totalorder %s242, %s244
      %p248 = scmp.eq.s32.totalorder %s30, 0
      %p249 = por %p247, %p248
      %p250 = scmp.ne.s32.totalorder %s242, %s244
      %p251 = scmp.eq.s32.totalorder %s35, 1
      %p252 = por %p250, %p251
      %p253 = scmp.ne.s32.totalorder %s244, %s245
      %p254 = scmp.eq.s32.totalorder %s35, 0
      %p255 = por %p253, %p254
      %p256 = scmp.ne.s32.totalorder %s244, %s245
      %p257 = scmp.eq.s32.totalorder %s36, 1
      %p258 = por %p256, %p257
      %p260 = scmp.ne.s32.totalorder %s245, %s259
      %p261 = scmp.eq.s32.totalorder %s36, 0
      %p262 = por %p260, %p261
      %s264 = sadd.s32 %s263, 1
      %p267 = scmp.eq.s32.totalorder %s30, 1
      %p268 = scmp.ne.s32.totalorder %s263, %s265
      %p269 = scmp.eq.s32.totalorder %s30, 0
      %p270 = por %p268, %p269
      %p271 = scmp.ne.s32.totalorder %s263, %s265
      %p272 = scmp.eq.s32.totalorder %s35, 1
      %p273 = por %p271, %p272
      %p274 = scmp.ne.s32.totalorder %s265, %s266
      %p275 = scmp.eq.s32.totalorder %s35, 0
      %p276 = por %p274, %p275
      %p277 = scmp.ne.s32.totalorder %s265, %s266
      %p278 = scmp.eq.s32.totalorder %s36, 1
      %p279 = por %p277, %p278
      %p281 = scmp.ne.s32.totalorder %s266, %s280
      %p282 = scmp.eq.s32.totalorder %s36, 0
      %p283 = por %p281, %p282
      %s285 = sadd.s32 %s284, 1
      %p288 = scmp.eq.s32.totalorder %s30, 1
      %p289 = scmp.ne.s32.totalorder %s284, %s286
      %p290 = scmp.eq.s32.totalorder %s30, 0
      %p291 = por %p289, %p290
      %p292 = scmp.ne.s32.totalorder %s284, %s286
      %p293 = scmp.eq.s32.totalorder %s35, 1
      %p294 = por %p292, %p293
      %p295 = scmp.ne.s32.totalorder %s286, %s287
      %p296 = scmp.eq.s32.totalorder %s35, 0
      %p297 = por %p295, %p296
      %p298 = scmp.ne.s32.totalorder %s286, %s287
      %p299 = scmp.eq.s32.totalorder %s36, 1
      %p300 = por %p298, %p299
      %p302 = scmp.ne.s32.totalorder %s287, %s301
      %p303 = scmp.eq.s32.totalorder %s36, 0
      %p304 = por %p302, %p303
      %s306 = sadd.s32 %s305, 1
      %p309 = scmp.eq.s32.totalorder %s30, 1
      %p310 = scmp.ne.s32.totalorder %s305, %s307
      %p311 = scmp.eq.s32.totalorder %s30, 0
      %p312 = por %p310, %p311
      %p313 = scmp.ne.s32.totalorder %s305, %s307
      %p314 = scmp.eq.s32.totalorder %s35, 1
      %p315 = por %p313, %p314
      %p316 = scmp.ne.s32.totalorder %s307, %s308
      %p317 = scmp.eq.s32.totalorder %s35, 0
      %p318 = por %p316, %p317
      %p319 = scmp.ne.s32.totalorder %s307, %s308
      %p320 = scmp.eq.s32.totalorder %s36, 1
      %p321 = por %p319, %p320
      %p323 = scmp.ne.s32.totalorder %s308, %s322
      %p324 = scmp.eq.s32.totalorder %s36, 0
      %p325 = por %p323, %p324
      %s327 = sadd.s32 %s326, 1
      %p330 = scmp.eq.s32.totalorder %s30, 1
      %p331 = scmp.ne.s32.totalorder %s326, %s328
      %p332 = scmp.eq.s32.totalorder %s30, 0
      %p333 = por %p331, %p332
      %p334 = scmp.ne.s32.totalorder %s326, %s328
      %p335 = scmp.eq.s32.totalorder %s35, 1
      %p336 = por %p334, %p335
      %p337 = scmp.ne.s32.totalorder %s328, %s329
      %p338 = scmp.eq.s32.totalorder %s35, 0
      %p339 = por %p337, %p338
      %p340 = scmp.ne.s32.totalorder %s328, %s329
      %p341 = scmp.eq.s32.totalorder %s36, 1
      %p342 = por %p340, %p341
      %p344 = scmp.ne.s32.totalorder %s329, %s343
      %p345 = scmp.eq.s32.totalorder %s36, 0
      %p346 = por %p344, %p345
      %s348 = sadd.s32 %s347, 1
      %p351 = scmp.eq.s32.totalorder %s30, 1
      %p352 = scmp.ne.s32.totalorder %s347, %s349
      %p353 = scmp.eq.s32.totalorder %s30, 0
      %p354 = por %p352, %p353
      %p355 = scmp.ne.s32.totalorder %s347, %s349
      %p356 = scmp.eq.s32.totalorder %s35, 1
      %p357 = por %p355, %p356
      %p358 = scmp.ne.s32.totalorder %s349, %s350
      %p359 = scmp.eq.s32.totalorder %s35, 0
      %p360 = por %p358, %p359
      %p361 = scmp.ne.s32.totalorder %s349, %s350
      %p362 = scmp.eq.s32.totalorder %s36, 1
      %p363 = por %p361, %p362
      %p365 = scmp.ne.s32.totalorder %s350, %s364
      %p366 = scmp.eq.s32.totalorder %s36, 0
      %p367 = por %p365, %p366
      %s369 = sadd.s32 %s368, 1
      %p372 = scmp.eq.s32.totalorder %s30, 1
      %p373 = scmp.ne.s32.totalorder %s368, %s370
      %p374 = scmp.eq.s32.totalorder %s30, 0
      %p375 = por %p373, %p374
      %p376 = scmp.ne.s32.totalorder %s368, %s370
      %p377 = scmp.eq.s32.totalorder %s35, 1
      %p378 = por %p376, %p377
      %p379 = scmp.ne.s32.totalorder %s370, %s371
      %p380 = scmp.eq.s32.totalorder %s35, 0
      %p381 = por %p379, %p380
      %p382 = scmp.ne.s32.totalorder %s370, %s371
      %p383 = scmp.eq.s32.totalorder %s36, 1
      %p384 = por %p382, %p383
      %p386 = scmp.ne.s32.totalorder %s371, %s385
      %p387 = scmp.eq.s32.totalorder %s36, 0
      %p388 = por %p386, %p387
      %s389 = ssub.s32 %s30, %s37
      %p390 = scmp.eq.s32.totalorder %s389, 0
      %s392 = sadd.s32 %s391, 1
      %s393 = scalar_select %p390, %s391, %s392
      %p396 = pneg %p390
      %p397 = scmp.eq.s32.totalorder %s30, 1
      %p398 = por %p396, %p397
      %p399 = scmp.ne.s32.totalorder %s391, %s394
      %p400 = scmp.eq.s32.totalorder %s30, 0
      %p401 = por %p399, %p400
      %p402 = scmp.ne.s32.totalorder %s391, %s394
      %p403 = scmp.eq.s32.totalorder %s35, 1
      %p404 = por %p402, %p403
      %p405 = scmp.ne.s32.totalorder %s394, %s395
      %p406 = scmp.eq.s32.totalorder %s35, 0
      %p407 = por %p405, %p406
      %p408 = scmp.ne.s32.totalorder %s394, %s395
      %p409 = scmp.eq.s32.totalorder %s36, 1
      %p410 = por %p408, %p409
      %p412 = scmp.ne.s32.totalorder %s395, %s411
      %p413 = scmp.eq.s32.totalorder %s36, 0
      %p414 = por %p412, %p413
      %s415 = ssub.s32 %s30, %s37
      %p416 = scmp.eq.s32.totalorder %s415, 0
      %s418 = sadd.s32 %s417, 1
      %s419 = scalar_select %p416, %s417, %s418
      %p422 = pneg %p416
      %p423 = scmp.eq.s32.totalorder %s30, 1
      %p424 = por %p422, %p423
      %p425 = scmp.ne.s32.totalorder %s417, %s420
      %p426 = scmp.eq.s32.totalorder %s30, 0
      %p427 = por %p425, %p426
      %p428 = scmp.ne.s32.totalorder %s417, %s420
      %p429 = scmp.eq.s32.totalorder %s35, 1
      %p430 = por %p428, %p429
      %p431 = scmp.ne.s32.totalorder %s420, %s421
      %p432 = scmp.eq.s32.totalorder %s35, 0
      %p433 = por %p431, %p432
      %p434 = scmp.ne.s32.totalorder %s420, %s421
      %p435 = scmp.eq.s32.totalorder %s36, 1
      %p436 = por %p434, %p435
      %p438 = scmp.ne.s32.totalorder %s421, %s437
      %p439 = scmp.eq.s32.totalorder %s36, 0
      %p440 = por %p438, %p439
      %p441 = scmp.le.s32.totalorder 1, %s30
      %p442 = scmp.lt.s32.totalorder %s30, 3
      %p443 = pnand %p441, %p442
      %p444 = pneg %p443
      // Predicated region
      $region9: #{tpu_custom_call.1} parent=5 // pred_check
        _
      $region10: #{tpu_custom_call.1} parent=5 // pred_check_branch
        %446 = sbr.rel (%p443) target = $region12
      $region11: #{tpu_custom_call.1} parent=5 // pred_region
        %s447 = ssub.s32 %s30, 1
        // Predicated region
        $region13: #{tpu_custom_call.1} parent=11 // pred_check
          %p448 = pneg %p129
        $region14: #{tpu_custom_call.1} parent=11 // pred_check_branch
          %450 = sbr.rel (%p448) target = $region16
        $region15: #{tpu_custom_call.1} parent=11 // pred_region
          _
        $region16: #{tpu_custom_call.1} parent=11 // pred_fallthru
          _
        // Predicated region
        $region17: #{tpu_custom_call.1} parent=11 // pred_check
          %p451 = pneg %p150
        $region18: #{tpu_custom_call.1} parent=11 // pred_check_branch
          %453 = sbr.rel (%p451) target = $region20
        $region19: #{tpu_custom_call.1} parent=11 // pred_region
          _
        $region20: #{tpu_custom_call.1} parent=11 // pred_fallthru
          _
        // Predicated region
        $region21: #{tpu_custom_call.1} parent=11 // pred_check
          %p454 = pneg %p171
        $region22: #{tpu_custom_call.1} parent=11 // pred_check_branch
          %456 = sbr.rel (%p454) target = $region24
        $region23: #{tpu_custom_call.1} parent=11 // pred_region
          _
        $region24: #{tpu_custom_call.1} parent=11 // pred_fallthru
          _
        // Predicated region
        $region25: #{tpu_custom_call.1} parent=11 // pred_check
          %p457 = pneg %p192
        $region26: #{tpu_custom_call.1} parent=11 // pred_check_branch
          %459 = sbr.rel (%p457) target = $region28
        $region27: #{tpu_custom_call.1} parent=11 // pred_region
          _
        $region28: #{tpu_custom_call.1} parent=11 // pred_fallthru
          _
        // Predicated region
        $region29: #{tpu_custom_call.1} parent=11 // pred_check
          %p460 = pneg %p213
        $region30: #{tpu_custom_call.1} parent=11 // pred_check_branch
          %462 = sbr.rel (%p460) target = $region32
        $region31: #{tpu_custom_call.1} parent=11 // pred_region
          _
        $region32: #{tpu_custom_call.1} parent=11 // pred_fallthru
          _
        // Predicated region
        $region33: #{tpu_custom_call.1} parent=11 // pred_check
          %p463 = pneg %p234
        $region34: #{tpu_custom_call.1} parent=11 // pred_check_branch
          %465 = sbr.rel (%p463) target = $region36
        $region35: #{tpu_custom_call.1} parent=11 // pred_region
          _
        $region36: #{tpu_custom_call.1} parent=11 // pred_fallthru
          _
        // Predicated region
        $region37: #{tpu_custom_call.1} parent=11 // pred_check
          %p466 = pneg %p255
        $region38: #{tpu_custom_call.1} parent=11 // pred_check_branch
          %468 = sbr.rel (%p466) target = $region40
        $region39: #{tpu_custom_call.1} parent=11 // pred_region
          _
        $region40: #{tpu_custom_call.1} parent=11 // pred_fallthru
          _
        // Predicated region
        $region41: #{tpu_custom_call.1} parent=11 // pred_check
          %p469 = pneg %p276
        $region42: #{tpu_custom_call.1} parent=11 // pred_check_branch
          %471 = sbr.rel (%p469) target = $region44
        $region43: #{tpu_custom_call.1} parent=11 // pred_region
          _
        $region44: #{tpu_custom_call.1} parent=11 // pred_fallthru
          _
        // Predicated region
        $region45: #{tpu_custom_call.1} parent=11 // pred_check
          %p472 = pneg %p297
        $region46: #{tpu_custom_call.1} parent=11 // pred_check_branch
          %474 = sbr.rel (%p472) target = $region48
        $region47: #{tpu_custom_call.1} parent=11 // pred_region
          _
        $region48: #{tpu_custom_call.1} parent=11 // pred_fallthru
          _
        // Predicated region
        $region49: #{tpu_custom_call.1} parent=11 // pred_check
          %p475 = pneg %p318
        $region50: #{tpu_custom_call.1} parent=11 // pred_check_branch
          %477 = sbr.rel (%p475) target = $region52
        $region51: #{tpu_custom_call.1} parent=11 // pred_region
          _
        $region52: #{tpu_custom_call.1} parent=11 // pred_fallthru
          _
        // Predicated region
        $region53: #{tpu_custom_call.1} parent=11 // pred_check
          %p478 = pneg %p339
        $region54: #{tpu_custom_call.1} parent=11 // pred_check_branch
          %480 = sbr.rel (%p478) target = $region56
        $region55: #{tpu_custom_call.1} parent=11 // pred_region
          _
        $region56: #{tpu_custom_call.1} parent=11 // pred_fallthru
          _
        // Predicated region
        $region57: #{tpu_custom_call.1} parent=11 // pred_check
          %p481 = pneg %p360
        $region58: #{tpu_custom_call.1} parent=11 // pred_check_branch
          %483 = sbr.rel (%p481) target = $region60
        $region59: #{tpu_custom_call.1} parent=11 // pred_region
          _
        $region60: #{tpu_custom_call.1} parent=11 // pred_fallthru
          _
        // Predicated region
        $region61: #{tpu_custom_call.1} parent=11 // pred_check
          %p484 = pneg %p381
        $region62: #{tpu_custom_call.1} parent=11 // pred_check_branch
          %486 = sbr.rel (%p484) target = $region64
        $region63: #{tpu_custom_call.1} parent=11 // pred_region
          _
        $region64: #{tpu_custom_call.1} parent=11 // pred_fallthru
          _
      $region12: #{tpu_custom_call.1} parent=5 // pred_fallthru
        _
      %p487 = scmp.lt.s32.totalorder %s30, 2
      // Predicated region
      $region65: #{tpu_custom_call.1} parent=5 // pred_check
        %p488 = pneg %p487
      $region66: #{tpu_custom_call.1} parent=5 // pred_check_branch
        %490 = sbr.rel (%p488) target = $region68
      $region67: #{tpu_custom_call.1} parent=5 // pred_region
        // Predicated region
        $region69: #{tpu_custom_call.1} parent=67 // pred_check
          %p491 = pneg %p50
        $region70: #{tpu_custom_call.1} parent=67 // pred_check_branch
          %493 = sbr.rel (%p491) target = $region72
        $region71: #{tpu_custom_call.1} parent=67 // pred_region
          %p494 = scmp.lt.s32.totalorder %s30, 1
          %s495 = scalar_select %p494, %s30, 1
          %s496 = smul.addr %s495, 8
          %s497 = scalar_lea.vmem %s0, %s496
        $region72: #{tpu_custom_call.1} parent=67 // pred_fallthru
          _
        // Predicated region
        $region73: #{tpu_custom_call.1} parent=67 // pred_check
          %p498 = pneg %p76
        $region74: #{tpu_custom_call.1} parent=67 // pred_check_branch
          %500 = sbr.rel (%p498) target = $region76
        $region75: #{tpu_custom_call.1} parent=67 // pred_region
          %p501 = scmp.lt.s32.totalorder %s30, 1
          %s502 = scalar_select %p501, %s30, 1
          %s503 = smul.addr %s502, 8
          %s504 = scalar_lea.vmem %s1, %s503
        $region76: #{tpu_custom_call.1} parent=67 // pred_fallthru
          _
        // Predicated region
        $region77: #{tpu_custom_call.1} parent=67 // pred_check
          %p505 = pneg %p102
        $region78: #{tpu_custom_call.1} parent=67 // pred_check_branch
          %507 = sbr.rel (%p505) target = $region80
        $region79: #{tpu_custom_call.1} parent=67 // pred_region
          %p508 = scmp.lt.s32.totalorder %s30, 1
          %s509 = scalar_select %p508, %s30, 1
          %s510 = smul.addr %s509, 8
          %s511 = scalar_lea.vmem %s2, %s510
        $region80: #{tpu_custom_call.1} parent=67 // pred_fallthru
          _
      $region68: #{tpu_custom_call.1} parent=5 // pred_fallthru
        _
      %p512 = scmp.le.s32.totalorder 1, %s30
      %p513 = scmp.lt.s32.totalorder %s30, 3
      %p514 = pnand %p512, %p513
      %p515 = pneg %p514
      // Predicated region
      $region81: #{tpu_custom_call.1} parent=5 // pred_check
        _
      $region82: #{tpu_custom_call.1} parent=5 // pred_check_branch
        %517 = sbr.rel (%p514) target = $region84
      $region83: #{tpu_custom_call.1} parent=5 // pred_region
        %s518 = ssub.s32 %s30, 1
        %p519 = scmp.lt.s32.totalorder %s35, 1
        %s520 = scalar_select %p519, %s35, 1
        %s521 = smul.addr %s520, 8
        %s522 = scalar_lea.vmem %s0, %s521
        %p523 = pneg %p56
        %p524 = pneg %p53
        %p525 = scmp.lt.s32.totalorder %s35, 1
        %s526 = scalar_select %p525, %s35, 1
        %s527 = smul.addr %s526, 8
        %s528 = scalar_lea.vmem %s1, %s527
        %p529 = pneg %p82
        %p530 = pneg %p79
        %p531 = scmp.lt.s32.totalorder %s35, 1
        %s532 = scalar_select %p531, %s35, 1
        %s533 = smul.addr %s532, 8
        %s534 = scalar_lea.vmem %s2, %s533
        %p535 = pneg %p108
        %p536 = pneg %p105
        %p537 = pneg %p129
        %p538 = pneg %p126
        %p539 = pneg %p150
        %p540 = pneg %p147
        %p541 = pneg %p171
        %p542 = pneg %p168
        %p543 = pneg %p192
        %p544 = pneg %p189
        %p545 = pneg %p213
        %p546 = pneg %p210
        %p547 = pneg %p234
        %p548 = pneg %p231
        %p549 = pneg %p255
        %p550 = pneg %p252
        %p551 = pneg %p276
        %p552 = pneg %p273
        %p553 = pneg %p297
        %p554 = pneg %p294
        %p555 = pneg %p318
        %p556 = pneg %p315
        %p557 = pneg %p339
        %p558 = pneg %p336
        %p559 = pneg %p360
        %p560 = pneg %p357
        %p561 = pneg %p381
        %p562 = pneg %p378
        %p563 = pneg %p407
        %p564 = pneg %p404
        %s565 = sand.u32 %s394, 1
        %s566 = scalar_lea.sflag [#allocation3], %s565
        %s567 = sand.u32 %s394, 1
        %s568 = smul.addr %s567, 8
        %s569 = scalar_lea.vmem [#allocation2], %s568
        %p570 = pneg %p433
        %p571 = pneg %p430
        %s572 = sand.u32 %s420, 1
        %s573 = scalar_lea.sflag [#allocation5], %s572
        %s574 = sand.u32 %s420, 1
        %s575 = smul.addr %s574, 32
        %s576 = scalar_lea.vmem [#allocation4], %s575
        %p577 = scmp.lt.s32.totalorder %s35, 1
        %s578 = scalar_select %p577, %s35, 1
        %s579 = smul.addr %s578, 8
        %s580 = scalar_lea.vmem %s0, %s579
        %p581 = scmp.lt.s32.totalorder %s35, 1
        %s582 = scalar_select %p581, %s35, 1
        %s583 = smul.addr %s582, 8
        %s584 = scalar_lea.vmem %s1, %s583
        %p585 = scmp.lt.s32.totalorder %s35, 1
        %s586 = scalar_select %p585, %s35, 1
        %s587 = smul.addr %s586, 8
        %s588 = scalar_lea.vmem %s2, %s587
        %v590 = vld [vmem:[%s580] sm:$0xff]
        %v591 = vld [vmem:[%s584] sm:$0xff]
        %v592 = vld [vmem:[%s588] sm:$0xff]
        %v593 = vld [vmem:[%s8] sm:$0x1]
        %v594 = vld [vmem:[%s9] sm:$0x1]
        %vm595 = vcmask 261120
        %v596 = vsel %vm595, %v590, 0.0
        %597 = vadd.xlane.f32.xlu0 %v596
        %v598 = vpop.xlane.xlu0 %597
        %v599 = vrcp.pop 32.0
        %v600 = vmul.f32 32.0, %v599
        %v601 = vsub.f32 1.0, %v600
        %v602 = vmul.f32 %v599, %v601
        %v603 = vadd.f32 %v599, %v602
        %vm604 = vweird.f32 %v599
        %v605 = vsel %vm604, %v599, %v603
        %v606 = vmul.f32 %v598, %v605
        %v607 = vsub.f32 %v590, %v606
        %v608 = vmul.f32 %v607, %v607
        %v609 = vsel %vm595, %v608, 0.0
        %610 = vadd.xlane.f32.xlu0 %v609
        %v611 = vpop.xlane.xlu0 %610
        %v612 = vmul.f32 %v611, %v605
        %v613 = vadd.f32 %v612, 1e-06
        %v614 = vrsqrt.pop %v613
        %v615 = vmul.f32 %v614, %v613
        %v616 = vmul.f32 %v615, %v614
        %v617 = vmul.f32 0.5, %v616
        %v618 = vsub.f32 1.5, %v617
        %v619 = vmul.f32 %v614, %v618
        %vm620 = vweird.f32 %v613
        %vm621 = vweird.f32 %v614
        %vm622 = vmor %vm620, %vm621
        %v623 = vsel %vm622, %v614, %v619
        %v624 = vmul.f32 %v607, %v623
        %v626 = vperm.slane %v593, 0
        %v628 = vmul.f32 %v624, %v626
        %v630 = vperm.slane %v594, 0
        %v632 = vadd.f32 %v628, %v630
        %v633 = vpack.c.bf16 %v632, %v632
        %v634 = vld [vmem:[%s3] sm:$0xf]
        %v635 = vld [vmem:[%s3 + $0x4] sm:$0xf]
        %v636 = vld [vmem:[%s3 + $0x8] sm:$0xf]
        %v637 = vld [vmem:[%s3 + $0xc] sm:$0xf]
        %v638 = vld [vmem:[%s3 + $0x10] sm:$0xf]
        %v639 = vld [vmem:[%s3 + $0x14] sm:$0xf]
        %v640 = vld [vmem:[%s3 + $0x18] sm:$0xf]
        %v641 = vld [vmem:[%s3 + $0x1c] sm:$0xf]
        %v642 = vld [vmem:[%s3 + $0x20] sm:$0xf]
        %v643 = vld [vmem:[%s3 + $0x24] sm:$0xf]
        %v644 = vld [vmem:[%s3 + $0x28] sm:$0xf]
        %v645 = vld [vmem:[%s3 + $0x2c] sm:$0xf]
        %v646 = vld [vmem:[%s3 + $0x30] sm:$0xf]
        %v647 = vld [vmem:[%s3 + $0x34] sm:$0xf]
        %v648 = vld [vmem:[%s3 + $0x38] sm:$0xf]
        %v649 = vld [vmem:[%s3 + $0x3c] sm:$0xf]
        %v654 = vunpack.c.l.b16 %v634
        %v655 = vunpack.c.l.b16 %v635
        %v656 = vunpack.c.l.b16 %v636
        %v657 = vunpack.c.l.b16 %v637
        %v658 = vpack.c.b16 %v655, %v654
        %v659 = vpack.c.b16 %v657, %v656
        %v663 = vsel %vm595, %v633, 0
        %665 = vmatpush.bf16.msra.mxu0 0
        %666 = vmatpush.bf16.msra.mxu0 0
        %667 = vmatpush.bf16.msra.mxu0 0
        %668 = vmatpush.bf16.msra.mxu0 0
        %669 = vmatpush.bf16.msra.mxu0 0
        %670 = vmatpush.bf16.msra.mxu0 0
        %671 = vmatpush.bf16.msra.mxu0 %v659
        %672 = vmatpush.bf16.msra.mxu0 %v658
        %673 = vmatmul.bf16.gmra.mxu0 %v663
        %v674 = vpop.f32.mrf.mxu0
        %v675 = vadd.f32 0.0, %v674
        %v676 = vpop.f32.mrf.mxu0
        %677 = vdwg.mxu0
        %v682 = vunpack.c.l.b16 %v638
        %v683 = vunpack.c.l.b16 %v639
        %v684 = vunpack.c.l.b16 %v640
        %v685 = vunpack.c.l.b16 %v641
        %v686 = vpack.c.b16 %v683, %v682
        %v687 = vpack.c.b16 %v685, %v684
        %690 = vmatpush.bf16.msra.mxu0 0
        %691 = vmatpush.bf16.msra.mxu0 0
        %692 = vmatpush.bf16.msra.mxu0 0
        %693 = vmatpush.bf16.msra.mxu0 0
        %694 = vmatpush.bf16.msra.mxu0 0
        %695 = vmatpush.bf16.msra.mxu0 0
        %696 = vmatpush.bf16.msra.mxu0 %v687
        %697 = vmatpush.bf16.msra.mxu0 %v686
        %698 = vmatmul.bf16.gmra.mxu0 %v663
        %v699 = vpop.f32.mrf.mxu0
        %v700 = vadd.f32 0.0, %v699
        %v701 = vpop.f32.mrf.mxu0
        %702 = vdwg.mxu0
        %v707 = vunpack.c.l.b16 %v642
        %v708 = vunpack.c.l.b16 %v643
        %v709 = vunpack.c.l.b16 %v644
        %v710 = vunpack.c.l.b16 %v645
        %v711 = vpack.c.b16 %v708, %v707
        %v712 = vpack.c.b16 %v710, %v709
        %715 = vmatpush.bf16.msra.mxu0 0
        %716 = vmatpush.bf16.msra.mxu0 0
        %717 = vmatpush.bf16.msra.mxu0 0
        %718 = vmatpush.bf16.msra.mxu0 0
        %719 = vmatpush.bf16.msra.mxu0 0
        %720 = vmatpush.bf16.msra.mxu0 0
        %721 = vmatpush.bf16.msra.mxu0 %v712
        %722 = vmatpush.bf16.msra.mxu0 %v711
        %723 = vmatmul.bf16.gmra.mxu0 %v663
        %v724 = vpop.f32.mrf.mxu0
        %v725 = vadd.f32 0.0, %v724
        %v726 = vpop.f32.mrf.mxu0
        %727 = vdwg.mxu0
        %v732 = vunpack.c.l.b16 %v646
        %v733 = vunpack.c.l.b16 %v647
        %v734 = vunpack.c.l.b16 %v648
        %v735 = vunpack.c.l.b16 %v649
        %v736 = vpack.c.b16 %v733, %v732
        %v737 = vpack.c.b16 %v735, %v734
        %740 = vmatpush.bf16.msra.mxu0 0
        %741 = vmatpush.bf16.msra.mxu0 0
        %742 = vmatpush.bf16.msra.mxu0 0
        %743 = vmatpush.bf16.msra.mxu0 0
        %744 = vmatpush.bf16.msra.mxu0 0
        %745 = vmatpush.bf16.msra.mxu0 0
        %746 = vmatpush.bf16.msra.mxu0 %v737
        %747 = vmatpush.bf16.msra.mxu0 %v736
        %748 = vmatmul.bf16.gmra.mxu0 %v663
        %v749 = vpop.f32.mrf.mxu0
        %v750 = vadd.f32 0.0, %v749
        %v751 = vpop.f32.mrf.mxu0
        %752 = vdwg.mxu0
        %v753 = vld [vmem:[%s4] sm:$0xf]
        %v754 = vld [vmem:[%s4 + $0x4] sm:$0xf]
        %v755 = vld [vmem:[%s4 + $0x8] sm:$0xf]
        %v756 = vld [vmem:[%s4 + $0xc] sm:$0xf]
        %v757 = vld [vmem:[%s4 + $0x10] sm:$0xf]
        %v758 = vld [vmem:[%s4 + $0x14] sm:$0xf]
        %v759 = vld [vmem:[%s4 + $0x18] sm:$0xf]
        %v760 = vld [vmem:[%s4 + $0x1c] sm:$0xf]
        %v761 = vld [vmem:[%s4 + $0x20] sm:$0xf]
        %v762 = vld [vmem:[%s4 + $0x24] sm:$0xf]
        %v763 = vld [vmem:[%s4 + $0x28] sm:$0xf]
        %v764 = vld [vmem:[%s4 + $0x2c] sm:$0xf]
        %v765 = vld [vmem:[%s4 + $0x30] sm:$0xf]
        %v766 = vld [vmem:[%s4 + $0x34] sm:$0xf]
        %v767 = vld [vmem:[%s4 + $0x38] sm:$0xf]
        %v768 = vld [vmem:[%s4 + $0x3c] sm:$0xf]
        %v773 = vunpack.c.l.b16 %v753
        %v774 = vunpack.c.l.b16 %v754
        %v775 = vunpack.c.l.b16 %v755
        %v776 = vunpack.c.l.b16 %v756
        %v777 = vpack.c.b16 %v774, %v773
        %v778 = vpack.c.b16 %v776, %v775
        %781 = vmatpush.bf16.msra.mxu0 0
        %782 = vmatpush.bf16.msra.mxu0 0
        %783 = vmatpush.bf16.msra.mxu0 0
        %784 = vmatpush.bf16.msra.mxu0 0
        %785 = vmatpush.bf16.msra.mxu0 0
        %786 = vmatpush.bf16.msra.mxu0 0
        %787 = vmatpush.bf16.msra.mxu0 %v778
        %788 = vmatpush.bf16.msra.mxu0 %v777
        %789 = vmatmul.bf16.gmra.mxu0 %v663
        %v790 = vpop.f32.mrf.mxu0
        %v791 = vadd.f32 0.0, %v790
        %v792 = vpop.f32.mrf.mxu0
        %793 = vdwg.mxu0
        %v798 = vunpack.c.l.b16 %v757
        %v799 = vunpack.c.l.b16 %v758
        %v800 = vunpack.c.l.b16 %v759
        %v801 = vunpack.c.l.b16 %v760
        %v802 = vpack.c.b16 %v799, %v798
        %v803 = vpack.c.b16 %v801, %v800
        %806 = vmatpush.bf16.msra.mxu0 0
        %807 = vmatpush.bf16.msra.mxu0 0
        %808 = vmatpush.bf16.msra.mxu0 0
        %809 = vmatpush.bf16.msra.mxu0 0
        %810 = vmatpush.bf16.msra.mxu0 0
        %811 = vmatpush.bf16.msra.mxu0 0
        %812 = vmatpush.bf16.msra.mxu0 %v803
        %813 = vmatpush.bf16.msra.mxu0 %v802
        %814 = vmatmul.bf16.gmra.mxu0 %v663
        %v815 = vpop.f32.mrf.mxu0
        %v816 = vadd.f32 0.0, %v815
        %v817 = vpop.f32.mrf.mxu0
        %818 = vdwg.mxu0
        %v823 = vunpack.c.l.b16 %v761
        %v824 = vunpack.c.l.b16 %v762
        %v825 = vunpack.c.l.b16 %v763
        %v826 = vunpack.c.l.b16 %v764
        %v827 = vpack.c.b16 %v824, %v823
        %v828 = vpack.c.b16 %v826, %v825
        %831 = vmatpush.bf16.msra.mxu0 0
        %832 = vmatpush.bf16.msra.mxu0 0
        %833 = vmatpush.bf16.msra.mxu0 0
        %834 = vmatpush.bf16.msra.mxu0 0
        %835 = vmatpush.bf16.msra.mxu0 0
        %836 = vmatpush.bf16.msra.mxu0 0
        %837 = vmatpush.bf16.msra.mxu0 %v828
        %838 = vmatpush.bf16.msra.mxu0 %v827
        %839 = vmatmul.bf16.gmra.mxu0 %v663
        %v840 = vpop.f32.mrf.mxu0
        %v841 = vadd.f32 0.0, %v840
        %v842 = vpop.f32.mrf.mxu0
        %843 = vdwg.mxu0
        %v848 = vunpack.c.l.b16 %v765
        %v849 = vunpack.c.l.b16 %v766
        %v850 = vunpack.c.l.b16 %v767
        %v851 = vunpack.c.l.b16 %v768
        %v852 = vpack.c.b16 %v849, %v848
        %v853 = vpack.c.b16 %v851, %v850
        %856 = vmatpush.bf16.msra.mxu0 0
        %857 = vmatpush.bf16.msra.mxu0 0
        %858 = vmatpush.bf16.msra.mxu0 0
        %859 = vmatpush.bf16.msra.mxu0 0
        %860 = vmatpush.bf16.msra.mxu0 0
        %861 = vmatpush.bf16.msra.mxu0 0
        %862 = vmatpush.bf16.msra.mxu0 %v853
        %863 = vmatpush.bf16.msra.mxu0 %v852
        %864 = vmatmul.bf16.gmra.mxu0 %v663
        %v865 = vpop.f32.mrf.mxu0
        %v866 = vadd.f32 0.0, %v865
        %v867 = vpop.f32.mrf.mxu0
        %868 = vdwg.mxu0
        %v869 = vld [vmem:[%s5] sm:$0xf]
        %v870 = vld [vmem:[%s5 + $0x4] sm:$0xf]
        %v871 = vld [vmem:[%s5 + $0x8] sm:$0xf]
        %v872 = vld [vmem:[%s5 + $0xc] sm:$0xf]
        %v873 = vld [vmem:[%s5 + $0x10] sm:$0xf]
        %v874 = vld [vmem:[%s5 + $0x14] sm:$0xf]
        %v875 = vld [vmem:[%s5 + $0x18] sm:$0xf]
        %v876 = vld [vmem:[%s5 + $0x1c] sm:$0xf]
        %v877 = vld [vmem:[%s5 + $0x20] sm:$0xf]
        %v878 = vld [vmem:[%s5 + $0x24] sm:$0xf]
        %v879 = vld [vmem:[%s5 + $0x28] sm:$0xf]
        %v880 = vld [vmem:[%s5 + $0x2c] sm:$0xf]
        %v881 = vld [vmem:[%s5 + $0x30] sm:$0xf]
        %v882 = vld [vmem:[%s5 + $0x34] sm:$0xf]
        %v883 = vld [vmem:[%s5 + $0x38] sm:$0xf]
        %v884 = vld [vmem:[%s5 + $0x3c] sm:$0xf]
        %v889 = vunpack.c.l.b16 %v869
        %v890 = vunpack.c.l.b16 %v870
        %v891 = vunpack.c.l.b16 %v871
        %v892 = vunpack.c.l.b16 %v872
        %v893 = vpack.c.b16 %v890, %v889
        %v894 = vpack.c.b16 %v892, %v891
        %897 = vmatpush.bf16.msra.mxu0 0
        %898 = vmatpush.bf16.msra.mxu0 0
        %899 = vmatpush.bf16.msra.mxu0 0
        %900 = vmatpush.bf16.msra.mxu0 0
        %901 = vmatpush.bf16.msra.mxu0 0
        %902 = vmatpush.bf16.msra.mxu0 0
        %903 = vmatpush.bf16.msra.mxu0 %v894
        %904 = vmatpush.bf16.msra.mxu0 %v893
        %905 = vmatmul.bf16.gmra.mxu0 %v663
        %v906 = vpop.f32.mrf.mxu0
        %v907 = vadd.f32 0.0, %v906
        %v908 = vpop.f32.mrf.mxu0
        %909 = vdwg.mxu0
        %v914 = vunpack.c.l.b16 %v873
        %v915 = vunpack.c.l.b16 %v874
        %v916 = vunpack.c.l.b16 %v875
        %v917 = vunpack.c.l.b16 %v876
        %v918 = vpack.c.b16 %v915, %v914
        %v919 = vpack.c.b16 %v917, %v916
        %922 = vmatpush.bf16.msra.mxu0 0
        %923 = vmatpush.bf16.msra.mxu0 0
        %924 = vmatpush.bf16.msra.mxu0 0
        %925 = vmatpush.bf16.msra.mxu0 0
        %926 = vmatpush.bf16.msra.mxu0 0
        %927 = vmatpush.bf16.msra.mxu0 0
        %928 = vmatpush.bf16.msra.mxu0 %v919
        %929 = vmatpush.bf16.msra.mxu0 %v918
        %930 = vmatmul.bf16.gmra.mxu0 %v663
        %v931 = vpop.f32.mrf.mxu0
        %v932 = vadd.f32 0.0, %v931
        %v933 = vpop.f32.mrf.mxu0
        %934 = vdwg.mxu0
        %v939 = vunpack.c.l.b16 %v877
        %v940 = vunpack.c.l.b16 %v878
        %v941 = vunpack.c.l.b16 %v879
        %v942 = vunpack.c.l.b16 %v880
        %v943 = vpack.c.b16 %v940, %v939
        %v944 = vpack.c.b16 %v942, %v941
        %947 = vmatpush.bf16.msra.mxu0 0
        %948 = vmatpush.bf16.msra.mxu0 0
        %949 = vmatpush.bf16.msra.mxu0 0
        %950 = vmatpush.bf16.msra.mxu0 0
        %951 = vmatpush.bf16.msra.mxu0 0
        %952 = vmatpush.bf16.msra.mxu0 0
        %953 = vmatpush.bf16.msra.mxu0 %v944
        %954 = vmatpush.bf16.msra.mxu0 %v943
        %955 = vmatmul.bf16.gmra.mxu0 %v663
        %v956 = vpop.f32.mrf.mxu0
        %v957 = vadd.f32 0.0, %v956
        %v958 = vpop.f32.mrf.mxu0
        %959 = vdwg.mxu0
        %v964 = vunpack.c.l.b16 %v881
        %v965 = vunpack.c.l.b16 %v882
        %v966 = vunpack.c.l.b16 %v883
        %v967 = vunpack.c.l.b16 %v884
        %v968 = vpack.c.b16 %v965, %v964
        %v969 = vpack.c.b16 %v967, %v966
        %972 = vmatpush.bf16.msra.mxu0 0
        %973 = vmatpush.bf16.msra.mxu0 0
        %974 = vmatpush.bf16.msra.mxu0 0
        %975 = vmatpush.bf16.msra.mxu0 0
        %976 = vmatpush.bf16.msra.mxu0 0
        %977 = vmatpush.bf16.msra.mxu0 0
        %978 = vmatpush.bf16.msra.mxu0 %v969
        %979 = vmatpush.bf16.msra.mxu0 %v968
        %980 = vmatmul.bf16.gmra.mxu0 %v663
        %v981 = vpop.f32.mrf.mxu0
        %v982 = vadd.f32 0.0, %v981
        %v983 = vpop.f32.mrf.mxu0
        %984 = vdwg.mxu0
        %v985 = vmul.f32 %v675, 0.35355338
        %v986 = vmul.f32 %v700, 0.35355338
        %v987 = vmul.f32 %v725, 0.35355338
        %v988 = vmul.f32 %v750, 0.35355338
        %v989 = vpack.c.bf16 %v985, %v985
        %v990 = vpack.c.bf16 %v986, %v986
        %v991 = vpack.c.bf16 %v987, %v987
        %v992 = vpack.c.bf16 %v988, %v988
        %v993 = vpack.c.bf16 %v791, %v791
        %v994 = vpack.c.bf16 %v816, %v816
        %v995 = vpack.c.bf16 %v841, %v841
        %v996 = vpack.c.bf16 %v866, %v866
        %vm997 = vcmp.gt.f32.partialorder %v591, 0.5
        %v998 = vsel %vm997, -1e+09, 0.0
        %vm999 = vcmask 64512
        %v1001 = vsel %vm999, %v989, 0
        %v1004 = vsel %vm999, %v993, 0
        %1006 = vmatpush.bf16.xpose.msra.mxu0 0
        %1007 = vmatpush.bf16.xpose.msra.mxu0 0
        %1008 = vmatpush.bf16.xpose.msra.mxu0 0
        %1009 = vmatpush.bf16.xpose.msra.mxu0 0
        %1010 = vmatpush.bf16.xpose.msra.mxu0 0
        %1011 = vmatpush.bf16.xpose.msra.mxu0 0
        %1012 = vmatpush.bf16.xpose.msra.mxu0 0
        %1013 = vmatpush.bf16.xpose.msra.mxu0 %v1004
        %1014 = vmatmul.bf16.gmra.mxu0 %v1001
        %v1015 = vpop.f32.mrf.mxu0
        %v1016 = vadd.f32 %v998, %v1015
        %v1017 = vpop.f32.mrf.mxu0
        %1018 = vdwg.mxu0
        %v1020 = vsel %vm999, %v990, 0
        %v1023 = vsel %vm999, %v994, 0
        %1025 = vmatpush.bf16.xpose.msra.mxu0 0
        %1026 = vmatpush.bf16.xpose.msra.mxu0 0
        %1027 = vmatpush.bf16.xpose.msra.mxu0 0
        %1028 = vmatpush.bf16.xpose.msra.mxu0 0
        %1029 = vmatpush.bf16.xpose.msra.mxu0 0
        %1030 = vmatpush.bf16.xpose.msra.mxu0 0
        %1031 = vmatpush.bf16.xpose.msra.mxu0 0
        %1032 = vmatpush.bf16.xpose.msra.mxu0 %v1023
        %1033 = vmatmul.bf16.gmra.mxu0 %v1020
        %v1034 = vpop.f32.mrf.mxu0
        %v1035 = vadd.f32 %v998, %v1034
        %v1036 = vpop.f32.mrf.mxu0
        %1037 = vdwg.mxu0
        %v1039 = vsel %vm999, %v991, 0
        %v1042 = vsel %vm999, %v995, 0
        %1044 = vmatpush.bf16.xpose.msra.mxu0 0
        %1045 = vmatpush.bf16.xpose.msra.mxu0 0
        %1046 = vmatpush.bf16.xpose.msra.mxu0 0
        %1047 = vmatpush.bf16.xpose.msra.mxu0 0
        %1048 = vmatpush.bf16.xpose.msra.mxu0 0
        %1049 = vmatpush.bf16.xpose.msra.mxu0 0
        %1050 = vmatpush.bf16.xpose.msra.mxu0 0
        %1051 = vmatpush.bf16.xpose.msra.mxu0 %v1042
        %1052 = vmatmul.bf16.gmra.mxu0 %v1039
        %v1053 = vpop.f32.mrf.mxu0
        %v1054 = vadd.f32 %v998, %v1053
        %v1055 = vpop.f32.mrf.mxu0
        %1056 = vdwg.mxu0
        %v1058 = vsel %vm999, %v992, 0
        %v1061 = vsel %vm999, %v996, 0
        %1063 = vmatpush.bf16.xpose.msra.mxu0 0
        %1064 = vmatpush.bf16.xpose.msra.mxu0 0
        %1065 = vmatpush.bf16.xpose.msra.mxu0 0
        %1066 = vmatpush.bf16.xpose.msra.mxu0 0
        %1067 = vmatpush.bf16.xpose.msra.mxu0 0
        %1068 = vmatpush.bf16.xpose.msra.mxu0 0
        %1069 = vmatpush.bf16.xpose.msra.mxu0 0
        %1070 = vmatpush.bf16.xpose.msra.mxu0 %v1061
        %1071 = vmatmul.bf16.gmra.mxu0 %v1058
        %v1072 = vpop.f32.mrf.mxu0
        %v1073 = vadd.f32 %v998, %v1072
        %v1074 = vpop.f32.mrf.mxu0
        %1075 = vdwg.mxu0
        %v1076 = vsel %vm999, %v1016, -inf
        %1077 = vmax.xlane.f32.xlu0 %v1076
        %v1078 = vpop.xlane.xlu0 %1077
        %v1079 = vsel %vm999, %v1035, -inf
        %1080 = vmax.xlane.f32.xlu0 %v1079
        %v1081 = vpop.xlane.xlu0 %1080
        %v1082 = vsel %vm999, %v1054, -inf
        %1083 = vmax.xlane.f32.xlu0 %v1082
        %v1084 = vpop.xlane.xlu0 %1083
        %v1085 = vsel %vm999, %v1073, -inf
        %1086 = vmax.xlane.f32.xlu0 %v1085
        %v1087 = vpop.xlane.xlu0 %1086
        %v1088 = vsub.f32 %v1016, %v1078
        %v1089 = vsub.f32 %v1035, %v1081
        %v1090 = vsub.f32 %v1054, %v1084
        %v1091 = vsub.f32 %v1073, %v1087
        %v1092 = vmul.f32 %v1088, 1.442695
        %v1093 = vpow.pop %v1092
        %v1094 = vmul.f32 %v1089, 1.442695
        %v1095 = vpow.pop %v1094
        %v1096 = vmul.f32 %v1090, 1.442695
        %v1097 = vpow.pop %v1096
        %v1098 = vmul.f32 %v1091, 1.442695
        %v1099 = vpow.pop %v1098
        %v1100 = vsel %vm999, %v1093, 0.0
        %1101 = vadd.xlane.f32.xlu0 %v1100
        %v1102 = vpop.xlane.xlu0 %1101
        %v1103 = vsel %vm999, %v1095, 0.0
        %1104 = vadd.xlane.f32.xlu0 %v1103
        %v1105 = vpop.xlane.xlu0 %1104
        %v1106 = vsel %vm999, %v1097, 0.0
        %1107 = vadd.xlane.f32.xlu0 %v1106
        %v1108 = vpop.xlane.xlu0 %1107
        %v1109 = vsel %vm999, %v1099, 0.0
        %1110 = vadd.xlane.f32.xlu0 %v1109
        %v1111 = vpop.xlane.xlu0 %1110
        %v1112 = vrcp.pop %v1102
        %v1113 = vrcp.pop %v1105
        %v1114 = vrcp.pop %v1108
        %v1115 = vrcp.pop %v1111
        %v1116 = vmul.f32 %v1093, %v1112
        %v1117 = vmul.f32 %v1095, %v1113
        %v1118 = vmul.f32 %v1097, %v1114
        %v1119 = vmul.f32 %v1099, %v1115
        %1120 = vst.msk [vmem:[%s576] sm:$0xff] %vm999, %v1116
        %1121 = vst.msk [vmem:[%s576 + $0x8] sm:$0xff] %vm999, %v1117
        %1122 = vst.msk [vmem:[%s576 + $0x10] sm:$0xff] %vm999, %v1118
        %1123 = vst.msk [vmem:[%s576 + $0x18] sm:$0xff] %vm999, %v1119
        %v1124 = vpack.c.bf16 %v1116, %v1116
        %v1125 = vpack.c.bf16 %v1117, %v1117
        %v1126 = vpack.c.bf16 %v1118, %v1118
        %v1127 = vpack.c.bf16 %v1119, %v1119
        %v1128 = vpack.c.bf16 %v907, %v907
        %v1129 = vpack.c.bf16 %v932, %v932
        %v1130 = vpack.c.bf16 %v957, %v957
        %v1131 = vpack.c.bf16 %v982, %v982
        %v1133 = vsel %vm999, %v1124, 0
        %vm1135 = vcmask 1043456
        %v1137 = vsel %vm1135, %v1128, 0
        %1139 = vmatpush.bf16.msra.mxu0 0
        %1140 = vmatpush.bf16.msra.mxu0 0
        %1141 = vmatpush.bf16.msra.mxu0 0
        %1142 = vmatpush.bf16.msra.mxu0 0
        %1143 = vmatpush.bf16.msra.mxu0 0
        %1144 = vmatpush.bf16.msra.mxu0 0
        %1145 = vmatpush.bf16.msra.mxu0 0
        %1146 = vmatpush.bf16.msra.mxu0 %v1137
        %1147 = vmatmul.bf16.gmra.mxu0 %v1133
        %v1148 = vpop.f32.mrf.mxu0
        %v1149 = vadd.f32 0.0, %v1148
        %v1150 = vpop.f32.mrf.mxu0
        %1151 = vdwg.mxu0
        %v1153 = vsel %vm999, %v1125, 0
        %v1156 = vsel %vm1135, %v1129, 0
        %1158 = vmatpush.bf16.msra.mxu0 0
        %1159 = vmatpush.bf16.msra.mxu0 0
        %1160 = vmatpush.bf16.msra.mxu0 0
        %1161 = vmatpush.bf16.msra.mxu0 0
        %1162 = vmatpush.bf16.msra.mxu0 0
        %1163 = vmatpush.bf16.msra.mxu0 0
        %1164 = vmatpush.bf16.msra.mxu0 0
        %1165 = vmatpush.bf16.msra.mxu0 %v1156
        %1166 = vmatmul.bf16.gmra.mxu0 %v1153
        %v1167 = vpop.f32.mrf.mxu0
        %v1168 = vadd.f32 0.0, %v1167
        %v1169 = vpop.f32.mrf.mxu0
        %1170 = vdwg.mxu0
        %v1172 = vsel %vm999, %v1126, 0
        %v1175 = vsel %vm1135, %v1130, 0
        %1177 = vmatpush.bf16.msra.mxu0 0
        %1178 = vmatpush.bf16.msra.mxu0 0
        %1179 = vmatpush.bf16.msra.mxu0 0
        %1180 = vmatpush.bf16.msra.mxu0 0
        %1181 = vmatpush.bf16.msra.mxu0 0
        %1182 = vmatpush.bf16.msra.mxu0 0
        %1183 = vmatpush.bf16.msra.mxu0 0
        %1184 = vmatpush.bf16.msra.mxu0 %v1175
        %1185 = vmatmul.bf16.gmra.mxu0 %v1172
        %v1186 = vpop.f32.mrf.mxu0
        %v1187 = vadd.f32 0.0, %v1186
        %v1188 = vpop.f32.mrf.mxu0
        %1189 = vdwg.mxu0
        %v1191 = vsel %vm999, %v1127, 0
        %v1194 = vsel %vm1135, %v1131, 0
        %1196 = vmatpush.bf16.msra.mxu0 0
        %1197 = vmatpush.bf16.msra.mxu0 0
        %1198 = vmatpush.bf16.msra.mxu0 0
        %1199 = vmatpush.bf16.msra.mxu0 0
        %1200 = vmatpush.bf16.msra.mxu0 0
        %1201 = vmatpush.bf16.msra.mxu0 0
        %1202 = vmatpush.bf16.msra.mxu0 0
        %1203 = vmatpush.bf16.msra.mxu0 %v1194
        %1204 = vmatmul.bf16.gmra.mxu0 %v1191
        %v1205 = vpop.f32.mrf.mxu0
        %v1206 = vadd.f32 0.0, %v1205
        %v1207 = vpop.f32.mrf.mxu0
        %1208 = vdwg.mxu0
        %v1209 = vpack.c.bf16 %v1149, %v1149
        %v1210 = vpack.c.bf16 %v1168, %v1168
        %v1211 = vpack.c.bf16 %v1187, %v1187
        %v1212 = vpack.c.bf16 %v1206, %v1206
        %v1213 = vld [vmem:[%s6] sm:$0xf]
        %v1214 = vld [vmem:[%s6 + $0x4] sm:$0xf]
        %v1215 = vld [vmem:[%s6 + $0x8] sm:$0xf]
        %v1216 = vld [vmem:[%s6 + $0xc] sm:$0xf]
        %v1218 = vsel %vm999, %v1209, 0
        %v1221 = vsel %vm1135, %v1213, 0
        %1223 = vmatpush.bf16.msra.mxu0 0
        %1224 = vmatpush.bf16.msra.mxu0 0
        %1225 = vmatpush.bf16.msra.mxu0 0
        %1226 = vmatpush.bf16.msra.mxu0 0
        %1227 = vmatpush.bf16.msra.mxu0 0
        %1228 = vmatpush.bf16.msra.mxu0 0
        %1229 = vmatpush.bf16.msra.mxu0 0
        %1230 = vmatpush.bf16.msra.mxu0 %v1221
        %1231 = vmatmul.bf16.gmra.mxu0 %v1218
        %v1232 = vpop.f32.mrf.mxu0
        %v1233 = vadd.f32 0.0, %v1232
        %v1234 = vpop.f32.mrf.mxu0
        %1235 = vdwg.mxu0
        %v1237 = vsel %vm999, %v1210, 0
        %v1240 = vsel %vm1135, %v1214, 0
        %1242 = vmatpush.bf16.msra.mxu0 0
        %1243 = vmatpush.bf16.msra.mxu0 0
        %1244 = vmatpush.bf16.msra.mxu0 0
        %1245 = vmatpush.bf16.msra.mxu0 0
        %1246 = vmatpush.bf16.msra.mxu0 0
        %1247 = vmatpush.bf16.msra.mxu0 0
        %1248 = vmatpush.bf16.msra.mxu0 0
        %1249 = vmatpush.bf16.msra.mxu0 %v1240
        %1250 = vmatmul.bf16.gmra.mxu0 %v1237
        %v1251 = vpop.f32.mrf.mxu0
        %v1252 = vadd.f32 0.0, %v1251
        %v1253 = vpop.f32.mrf.mxu0
        %1254 = vdwg.mxu0
        %v1256 = vsel %vm999, %v1211, 0
        %v1259 = vsel %vm1135, %v1215, 0
        %1261 = vmatpush.bf16.msra.mxu0 0
        %1262 = vmatpush.bf16.msra.mxu0 0
        %1263 = vmatpush.bf16.msra.mxu0 0
        %1264 = vmatpush.bf16.msra.mxu0 0
        %1265 = vmatpush.bf16.msra.mxu0 0
        %1266 = vmatpush.bf16.msra.mxu0 0
        %1267 = vmatpush.bf16.msra.mxu0 0
        %1268 = vmatpush.bf16.msra.mxu0 %v1259
        %1269 = vmatmul.bf16.gmra.mxu0 %v1256
        %v1270 = vpop.f32.mrf.mxu0
        %v1271 = vadd.f32 0.0, %v1270
        %v1272 = vpop.f32.mrf.mxu0
        %1273 = vdwg.mxu0
        %v1275 = vsel %vm999, %v1212, 0
        %v1278 = vsel %vm1135, %v1216, 0
        %1280 = vmatpush.bf16.msra.mxu0 0
        %1281 = vmatpush.bf16.msra.mxu0 0
        %1282 = vmatpush.bf16.msra.mxu0 0
        %1283 = vmatpush.bf16.msra.mxu0 0
        %1284 = vmatpush.bf16.msra.mxu0 0
        %1285 = vmatpush.bf16.msra.mxu0 0
        %1286 = vmatpush.bf16.msra.mxu0 0
        %1287 = vmatpush.bf16.msra.mxu0 %v1278
        %1288 = vmatmul.bf16.gmra.mxu0 %v1275
        %v1289 = vpop.f32.mrf.mxu0
        %v1290 = vadd.f32 0.0, %v1289
        %v1291 = vpop.f32.mrf.mxu0
        %1292 = vdwg.mxu0
        %v1293 = vsel %vm595, %v1233, 0.0
        %v1294 = vsel %vm595, %v1252, 0.0
        %v1295 = vadd.f32 %v1293, %v1294
        %v1296 = vsel %vm595, %v1271, 0.0
        %v1297 = vadd.f32 %v1295, %v1296
        %v1298 = vsel %vm595, %v1290, 0.0
        %v1299 = vadd.f32 %v1297, %v1298
        %v1300 = vld [vmem:[%s7] sm:$0x1]
        %v1302 = vperm.slane %v1300, 0
        %v1304 = vadd.f32 %v1299, %v1302
        %v1305 = vadd.f32 %v1304, %v590
        %1307 = vset.pattern.permute.xlu0 0
        %1308 = vperm.xlu0 %1307, %v592
        %v1309 = vpop.permute.xlu0 %1308
        %v1311 = vmul.f32 %v1305, %v1309
        %v1312 = vld [vmem:[%s14] sm:$0x1]
        %v1313 = vld [vmem:[%s15] sm:$0x1]
        %v1314 = vsel %vm595, %v1311, 0.0
        %1315 = vadd.xlane.f32.xlu0 %v1314
        %v1316 = vpop.xlane.xlu0 %1315
        %v1317 = vmul.f32 %v1316, %v605
        %v1318 = vsub.f32 %v1311, %v1317
        %v1319 = vmul.f32 %v1318, %v1318
        %v1320 = vsel %vm595, %v1319, 0.0
        %1321 = vadd.xlane.f32.xlu0 %v1320
        %v1322 = vpop.xlane.xlu0 %1321
        %v1323 = vmul.f32 %v1322, %v605
        %v1324 = vadd.f32 %v1323, 1e-06
        %v1325 = vrsqrt.pop %v1324
        %v1326 = vmul.f32 %v1325, %v1324
        %v1327 = vmul.f32 %v1326, %v1325
        %v1328 = vmul.f32 0.5, %v1327
        %v1329 = vsub.f32 1.5, %v1328
        %v1330 = vmul.f32 %v1325, %v1329
        %vm1331 = vweird.f32 %v1324
        %vm1332 = vweird.f32 %v1325
        %vm1333 = vmor %vm1331, %vm1332
        %v1334 = vsel %vm1333, %v1325, %v1330
        %v1335 = vmul.f32 %v1318, %v1334
        %v1337 = vperm.slane %v1312, 0
        %v1339 = vmul.f32 %v1335, %v1337
        %v1341 = vperm.slane %v1313, 0
        %v1343 = vadd.f32 %v1339, %v1341
        %v1344 = vpack.c.bf16 %v1343, %v1343
        %v1345 = vld [vmem:[%s10] sm:$0xf]
        %v1346 = vld [vmem:[%s10 + $0x4] sm:$0xf]
        %v1347 = vld [vmem:[%s10 + $0x8] sm:$0xf]
        %v1348 = vld [vmem:[%s10 + $0xc] sm:$0xf]
        %v1349 = vld [vmem:[%s11] sm:$0x1]
        %v1351 = vperm.slane %v1349, 0
        %v1357 = vunpack.c.l.b16 %v1345
        %v1358 = vunpack.c.l.b16 %v1346
        %v1359 = vunpack.c.l.b16 %v1347
        %v1360 = vunpack.c.l.b16 %v1348
        %v1361 = vpack.c.b16 %v1358, %v1357
        %v1362 = vpack.c.b16 %v1360, %v1359
        %v1366 = vsel %vm595, %v1344, 0
        %1368 = vmatpush.bf16.msra.mxu0 0
        %1369 = vmatpush.bf16.msra.mxu0 0
        %1370 = vmatpush.bf16.msra.mxu0 0
        %1371 = vmatpush.bf16.msra.mxu0 0
        %1372 = vmatpush.bf16.msra.mxu0 0
        %1373 = vmatpush.bf16.msra.mxu0 0
        %1374 = vmatpush.bf16.msra.mxu0 %v1362
        %1375 = vmatpush.bf16.msra.mxu0 %v1361
        %1376 = vmatmul.bf16.gmra.mxu0 %v1366
        %v1377 = vpop.f32.mrf.mxu0
        %v1378 = vadd.f32 %v1351, %v1377
        %v1379 = vpop.f32.mrf.mxu0
        %1380 = vdwg.mxu0
        %v1381 = vmul.f32 %v1378, 0.5
        %v1382 = vmul.f32 %v1378, 0.044715
        %v1383 = vmul.f32 %v1382, %v1378
        %v1384 = vmul.f32 %v1383, %v1378
        %v1385 = vadd.f32 %v1378, %v1384
        %v1386 = vmul.f32 %v1385, 0.7978846
        %v1387 = vtanh.pop %v1386
        %v1388 = vadd.f32 %v1387, 1.0
        %v1389 = vmul.f32 %v1381, %v1388
        %v1390 = vpack.c.bf16 %v1389, %v1389
        %v1391 = vld [vmem:[%s12] sm:$0xf]
        %v1392 = vld [vmem:[%s12 + $0x4] sm:$0xf]
        %v1393 = vld [vmem:[%s12 + $0x8] sm:$0xf]
        %v1394 = vld [vmem:[%s12 + $0xc] sm:$0xf]
        %v1395 = vld [vmem:[%s12 + $0x10] sm:$0xf]
        %v1396 = vld [vmem:[%s12 + $0x14] sm:$0xf]
        %v1397 = vld [vmem:[%s12 + $0x18] sm:$0xf]
        %v1398 = vld [vmem:[%s12 + $0x1c] sm:$0xf]
        %v1399 = vld [vmem:[%s13] sm:$0x1]
        %v1401 = vperm.slane %v1399, 0
        %v1411 = vunpack.c.l.b16 %v1391
        %v1412 = vunpack.c.l.b16 %v1392
        %v1413 = vunpack.c.l.b16 %v1393
        %v1414 = vunpack.c.l.b16 %v1394
        %v1415 = vunpack.c.l.b16 %v1395
        %v1416 = vunpack.c.l.b16 %v1396
        %v1417 = vunpack.c.l.b16 %v1397
        %v1418 = vunpack.c.l.b16 %v1398
        %v1419 = vpack.c.b16 %v1412, %v1411
        %v1420 = vpack.c.b16 %v1414, %v1413
        %v1421 = vpack.c.b16 %v1416, %v1415
        %v1422 = vpack.c.b16 %v1418, %v1417
        %vm1427 = vcmask 523264
        %v1429 = vsel %vm1427, %v1390, 0
        %1431 = vmatpush.bf16.msra.mxu0 0
        %1432 = vmatpush.bf16.msra.mxu0 0
        %1433 = vmatpush.bf16.msra.mxu0 0
        %1434 = vmatpush.bf16.msra.mxu0 0
        %1435 = vmatpush.bf16.msra.mxu0 %v1422
        %1436 = vmatpush.bf16.msra.mxu0 %v1421
        %1437 = vmatpush.bf16.msra.mxu0 %v1420
        %1438 = vmatpush.bf16.msra.mxu0 %v1419
        %1439 = vmatmul.bf16.gmra.mxu0 %v1429
        %v1440 = vpop.f32.mrf.mxu0
        %v1441 = vadd.f32 %v1401, %v1440
        %v1442 = vpop.f32.mrf.mxu0
        %1443 = vdwg.mxu0
        %v1444 = vadd.f32 %v1441, %v1311
        %v1445 = vmul.f32 %v1444, %v1309
        %1446 = vst.msk [vmem:[%s569] sm:$0xff] %vm595, %v1445
        %s1447 = sand.u32 %s394, 1
        %s1448 = scalar_lea.sflag [#allocation3], %s1447
        %s1449 = sand.u32 %s394, 1
        %s1450 = smul.addr %s1449, 8
        %s1451 = scalar_lea.vmem [#allocation2], %s1450
        %s1452 = sand.u32 %s420, 1
        %s1453 = scalar_lea.sflag [#allocation5], %s1452
        %s1454 = sand.u32 %s420, 1
        %s1455 = smul.addr %s1454, 32
        %s1456 = scalar_lea.vmem [#allocation4], %s1455
        // Predicated region
        $region85: #{tpu_custom_call.1} parent=83 // pred_check
          %p1457 = pneg %p404
        $region86: #{tpu_custom_call.1} parent=83 // pred_check_branch
          %1459 = sbr.rel (%p1457) target = $region88
        $region87: #{tpu_custom_call.1} parent=83 // pred_region
          %1461 = vsyncadd %s1448, 0
          %s1462 = smul.addr %s35, 8
          %s1463 = scalar_lea.hbm %s16, %s1462
          %s1465 = sshll.u32 %s1451, 4
          %s1466 = int_to_ptr.vmem [resolvable:$true] %s1465
          %s1467 = sshll.u32 %s1463, 4
          %s1468 = int_to_ptr.hbm [resolvable:$true] %s1467
          %1470 = dma.vmem_to_hbm [thread:$0]  %s1466, 128, %s1468, %s1448
        $region88: #{tpu_custom_call.1} parent=83 // pred_fallthru
          _
        // Predicated region
        $region89: #{tpu_custom_call.1} parent=83 // pred_check
          %p1471 = pneg %p430
        $region90: #{tpu_custom_call.1} parent=83 // pred_check_branch
          %1473 = sbr.rel (%p1471) target = $region92
        $region91: #{tpu_custom_call.1} parent=83 // pred_region
          %1475 = vsyncadd %s1453, 0
          %s1476 = smul.addr %s35, 4
          %s1477 = smul.addr %s1476, 8
          %s1478 = scalar_lea.hbm %s17, %s1477
          %s1479 = sshll.u32 %s1456, 4
          %s1480 = int_to_ptr.vmem [resolvable:$true] %s1479
          %s1481 = sshll.u32 %s1478, 4
          %s1482 = int_to_ptr.hbm [resolvable:$true] %s1481
          %1487 = dma.vmem_to_hbm [thread:$0]  %s1480, 512, %s1482, %s1453, 128, 128, 8
        $region92: #{tpu_custom_call.1} parent=83 // pred_fallthru
          _
      $region84: #{tpu_custom_call.1} parent=5 // pred_fallthru
        _
      %p1488 = scmp.le.s32.totalorder 2, %s30
      // Predicated region
      $region93: #{tpu_custom_call.1} parent=5 // pred_check
        %p1489 = pneg %p1488
      $region94: #{tpu_custom_call.1} parent=5 // pred_check_branch
        %1491 = sbr.rel (%p1489) target = $region96
      $region95: #{tpu_custom_call.1} parent=5 // pred_region
        %s1492 = ssub.s32 %s30, 2
        // Predicated region
        $region97: #{tpu_custom_call.1} parent=95 // pred_check
          %p1493 = pneg %p410
        $region98: #{tpu_custom_call.1} parent=95 // pred_check_branch
          %1495 = sbr.rel (%p1493) target = $region100
        $region99: #{tpu_custom_call.1} parent=95 // pred_region
          %s1496 = sand.u32 %s395, 1
          %s1497 = scalar_lea.sflag [#allocation3], %s1496
          %s1498 = sand.u32 %s395, 1
          %s1499 = smul.addr %s1498, 8
          %s1500 = scalar_lea.vmem [#allocation2], %s1499
          %1502 = dma.done %s1497, 128
        $region100: #{tpu_custom_call.1} parent=95 // pred_fallthru
          _
        // Predicated region
        $region101: #{tpu_custom_call.1} parent=95 // pred_check
          %p1503 = pneg %p436
        $region102: #{tpu_custom_call.1} parent=95 // pred_check_branch
          %1505 = sbr.rel (%p1503) target = $region104
        $region103: #{tpu_custom_call.1} parent=95 // pred_region
          %s1506 = sand.u32 %s421, 1
          %s1507 = scalar_lea.sflag [#allocation5], %s1506
          %s1508 = sand.u32 %s421, 1
          %s1509 = smul.addr %s1508, 32
          %s1510 = scalar_lea.vmem [#allocation4], %s1509
          %1512 = dma.done %s1507, 512
        $region104: #{tpu_custom_call.1} parent=95 // pred_fallthru
          _
      $region96: #{tpu_custom_call.1} parent=5 // pred_fallthru
        _
    $region6: #{tpu_custom_call.1} parent=1 // loop_footer
      %s34 = sadd.s32 1, %s30
    $region7: #{tpu_custom_call.1} parent=1 // loop_footer_branch
      %29 = sbr.rel target = $region3
    $region8: #{tpu_custom_call.1} parent=1 // loop_exit
      _
    %1513 = vsyncpa [#allocation3], 1
    %s1514 = scalar_lea.sflag [#allocation3], 1
    %1515 = vsyncpa %s1514, 1
    %1516 = vsyncpa [#allocation5], 1
    %s1517 = scalar_lea.sflag [#allocation5], 1
    %1518 = vsyncpa %s1517, 1

</llo_original>
